<compile_context>
chip_gen: v6e
topology: v6e:2x2x1
jax: 0.10.0
libtpu: 0.0.40
codegen_flags: <defaults>
</compile_context>

<pallas_src>
import functools

import jax
import jax.numpy as jnp
from jax import lax
from jax.experimental import pallas as pl
from jax.experimental.pallas import tpu as pltpu


# ----------------------------------------------------------------------------
# Pallas kernel: KxK conv (stride 1, 'same') fused with folded BatchNorm and an
# activation.  One grid step = one (co-tile, row-tile, batch) block.
# ----------------------------------------------------------------------------
def conv_bn_act_kernel(x_ref, w_ref, scale_ref, bias_ref, o_ref, *,
                       W, Wp_pad, Cin, K, tile_h, act):
    # x_ref:     (1, Hp, Wp_pad, Cin)   full padded image (resident across co/h)
    # w_ref:     (K*K, Cin, tile_co)    bf16 weight taps for this co tile
    # scale_ref: (1, tile_co)           folded BN scale (f32)
    # bias_ref:  (1, tile_co)           folded BN bias  (f32)
    # o_ref:     (1, tile_h, W, tile_co)
    tile_co = o_ref.shape[-1]
    h = pl.program_id(1)
    M = tile_h * Wp_pad

    acc = jnp.zeros((M, tile_co), jnp.float32)
    for dy in range(K):
        # Contiguous row band; the reshape is layout-preserving (Wp_pad % 8 == 0).
        rows = x_ref[0, pl.ds(h * tile_h + dy, tile_h), :, :]
        xrow = rows.reshape(M, Cin).astype(jnp.bfloat16)
        for dx in range(K):
            z = jnp.dot(xrow, w_ref[dy * K + dx],
                        preferred_element_type=jnp.float32)
            if dx:
                # acc[r] += z[r + dx]: XLU sublane rotate (wrap-around only
                # touches padded columns w >= W, which are never stored).
                z = pltpu.roll(z, M - dx, axis=0)
            acc = acc + z

    y = acc * scale_ref[...] + bias_ref[...]
    if act == "relu":
        y = jnp.maximum(y, 0.0)
    elif act == "sigmoid":
        y = jax.nn.sigmoid(y)
    y = y.reshape(tile_h, Wp_pad, tile_co)[:, :W, :]
    o_ref[...] = y.reshape(1, tile_h, W, tile_co).astype(o_ref.dtype)


def conv_bn_act(x, w, scale, bias, *, K, act):
    """x: (N, H, W, Cin) f32 NHWC; w: (K, K, Cin, Cout) (bf16 or f32).
    Returns (N, H, W, Cout) f32."""
    N, H, W, Cin = x.shape
    Cout = w.shape[-1]
    pad = K // 2
    Hp = H + 2 * pad
    Wp = W + 2 * pad
    Wp_pad = ((Wp + 7) // 8) * 8      # sublane-aligned padded width
    xp = jnp.pad(x, ((0, 0), (pad, pad), (pad, pad + Wp_pad - Wp), (0, 0)))

    Cout_pad = ((Cout + 127) // 128) * 128   # lane-dense output channels
    wt = w.reshape(K * K, Cin, Cout).astype(jnp.bfloat16)
    scale_p = scale.astype(jnp.float32)
    bias_p = bias.astype(jnp.float32)
    if Cout_pad != Cout:
        wt = jnp.pad(wt, ((0, 0), (0, 0), (0, Cout_pad - Cout)))
        scale_p = jnp.pad(scale_p, (0, Cout_pad - Cout))
        bias_p = jnp.pad(bias_p, (0, Cout_pad - Cout))
    scale_p = scale_p.reshape(1, Cout_pad)
    bias_p = bias_p.reshape(1, Cout_pad)

    # 256-wide co tiles for the deep layers (v6e/v7x MXU), 128 otherwise.
    tile_co = 256 if Cout_pad % 256 == 0 else 128
    # Largest power-of-two row tile dividing H that keeps the accumulator small
    # (<= 256 sublanes => acc is at most ~32-64 vregs).
    tile_h = 1
    while H % (tile_h * 2) == 0 and (tile_h * 2) * Wp_pad <= 256:
        tile_h *= 2

    grid = (Cout_pad // tile_co, H // tile_h, N)
    kernel = functools.partial(conv_bn_act_kernel, W=W, Wp_pad=Wp_pad,
                               Cin=Cin, K=K, tile_h=tile_h, act=act)
    out = pl.pallas_call(
        kernel,
        out_shape=jax.ShapeDtypeStruct((N, H, W, Cout_pad), jnp.float32),
        grid_spec=pltpu.PrefetchScalarGridSpec(
            num_scalar_prefetch=0,
            grid=grid,
            in_specs=[
                # Full padded image: block index depends only on n, so it stays
                # resident in VMEM across the co and h grid axes.
                pl.BlockSpec((1, Hp, Wp_pad, Cin), lambda co, h, n: (n, 0, 0, 0)),
                # Weight tile: depends only on co (outermost) -> fetched once.
                pl.BlockSpec((K * K, Cin, tile_co), lambda co, h, n: (0, 0, co)),
                pl.BlockSpec((1, tile_co), lambda co, h, n: (0, co)),
                pl.BlockSpec((1, tile_co), lambda co, h, n: (0, co)),
            ],
            out_specs=pl.BlockSpec((1, tile_h, W, tile_co),
                                   lambda co, h, n: (n, h, 0, co)),
        ),
        compiler_params=pltpu.CompilerParams(
            dimension_semantics=("parallel", "parallel", "arbitrary"),
            vmem_limit_bytes=48 * 1024 * 1024,   # fits v7x's 64 MiB VMEM
        ),
    )(xp, wt, scale_p, bias_p)
    if Cout_pad != Cout:
        out = out[..., :Cout]
    return out


# ----------------------------------------------------------------------------
# Glue ops kept in plain JAX: max-pool 2x2, bilinear x2 upsample, concat.
# ----------------------------------------------------------------------------
def maxpool2(x):
    N, H, W, C = x.shape
    return x.reshape(N, H // 2, 2, W // 2, 2, C).max(axis=(2, 4))


def upsample2(x):
    # nn.Upsample(scale_factor=2, mode='bilinear', align_corners=False)
    # == half-pixel centers == jax.image.resize 'bilinear'.
    N, H, W, C = x.shape
    return jax.image.resize(x, (N, 2 * H, 2 * W, C), method="bilinear")


# ----------------------------------------------------------------------------
# Deterministic parameter construction (conv weights in bf16, folded BN in f32).
# ----------------------------------------------------------------------------
def init_conv_bn(key, cin, cout, k):
    k1, k2, k3, k4, k5 = jax.random.split(key, 5)
    fan_in = cin * k * k
    w = jax.random.normal(k1, (k, k, cin, cout), jnp.float32) / jnp.sqrt(fan_in)
    gamma = 1.0 + 0.1 * jax.random.normal(k2, (cout,), jnp.float32)
    beta = 0.1 * jax.random.normal(k3, (cout,), jnp.float32)
    running_mean = 0.1 * jax.random.normal(k4, (cout,), jnp.float32)
    running_var = 0.9 + 0.1 * jnp.abs(jax.random.normal(k5, (cout,), jnp.float32))
    scale = gamma / jnp.sqrt(running_var + 1e-5)
    bias = beta - running_mean * scale
    return (w.astype(jnp.bfloat16), scale, bias)


def init_conv_block(key, cin, cout):
    k1, k2 = jax.random.split(key)
    return (init_conv_bn(k1, cin, cout, 3), init_conv_bn(k2, cout, cout, 3))


def apply_conv_block(x, params):
    (w1, s1, b1), (w2, s2, b2) = params
    x = conv_bn_act(x, w1, s1, b1, K=3, act="relu")
    x = conv_bn_act(x, w2, s2, b2, K=3, act="relu")
    return x


def build_unet_params(key):
    nb = [32, 64, 128, 256, 512, 1024]
    keys = jax.random.split(key, 12)
    params = {}
    enc_in = [3, nb[0], nb[1], nb[2], nb[3], nb[4]]
    for i in range(6):
        params[f"enc_{i}"] = init_conv_block(keys[i], enc_in[i], nb[i])
    dec_in = {4: nb[5] + nb[4], 3: nb[4] + nb[3], 2: nb[3] + nb[2],
              1: nb[2] + nb[1], 0: nb[1] + nb[0]}
    dec_out = {4: nb[4], 3: nb[3], 2: nb[2], 1: nb[1], 0: nb[0]}
    for j, d in enumerate([4, 3, 2, 1, 0]):
        params[f"dec_{d}"] = init_conv_block(keys[6 + j], dec_in[d], dec_out[d])
    params["last"] = init_conv_bn(keys[11], nb[0], 3, 1)
    return params


def unet_forward(x_nchw, params):
    x = jnp.transpose(x_nchw, (0, 2, 3, 1))  # NCHW -> NHWC
    enc_0 = apply_conv_block(x, params["enc_0"])
    enc_1 = apply_conv_block(maxpool2(enc_0), params["enc_1"])
    enc_2 = apply_conv_block(maxpool2(enc_1), params["enc_2"])
    enc_3 = apply_conv_block(maxpool2(enc_2), params["enc_3"])
    enc_4 = apply_conv_block(maxpool2(enc_3), params["enc_4"])
    enc_5 = apply_conv_block(maxpool2(enc_4), params["enc_5"])

    # TODO(synk): the skip-connection concat could be fused into the first
    # decoder conv (two-input contraction) to avoid materializing it in HBM.
    dec_4 = apply_conv_block(jnp.concatenate([enc_4, upsample2(enc_5)], axis=-1),
                             params["dec_4"])
    dec_3 = apply_conv_block(jnp.concatenate([enc_3, upsample2(dec_4)], axis=-1),
                             params["dec_3"])
    dec_2 = apply_conv_block(jnp.concatenate([enc_2, upsample2(dec_3)], axis=-1),
                             params["dec_2"])
    dec_1 = apply_conv_block(jnp.concatenate([enc_1, upsample2(dec_2)], axis=-1),
                             params["dec_1"])
    dec_0 = apply_conv_block(jnp.concatenate([enc_0, upsample2(dec_1)], axis=-1),
                             params["dec_0"])

    wl, sl, bl = params["last"]
    last = conv_bn_act(dec_0, wl, sl, bl, K=1, act="sigmoid")
    return jnp.transpose(last, (0, 3, 1, 2))  # NHWC -> NCHW


# ----------------------------------------------------------------------------
# Pure-JAX reference for a single fused conv (sanity check of the kernel).
# ----------------------------------------------------------------------------
def conv_bn_act_ref(x, w, scale, bias, *, K, act):
    pad = K // 2
    dn = lax.conv_dimension_numbers(x.shape, w.shape, ("NHWC", "HWIO", "NHWC"))
    y = lax.conv_general_dilated(x, w, (1, 1), [(pad, pad), (pad, pad)],
                                 dimension_numbers=dn)
    y = y * scale + bias
    if act == "relu":
        y = jnp.maximum(y, 0.0)
    elif act == "sigmoid":
        y = jax.nn.sigmoid(y)
    return y


def _check_conv(key, H, W, cin, conv_params, K, act, tag):
    x = jax.random.normal(key, (1, H, W, cin), jnp.float32)
    w, s, b = conv_params
    got = conv_bn_act(x, w, s, b, K=K, act=act)
    # The kernel rounds inputs to bf16 before the MXU; give the reference the
    # same rounded operands so the check isolates kernel structure.
    xr = x.astype(jnp.bfloat16).astype(jnp.float32)
    want = conv_bn_act_ref(xr, w.astype(jnp.float32), s, b, K=K, act=act)
    err = float(jnp.max(jnp.abs(got - want)))
    assert err < 1e-2, f"conv kernel mismatch ({tag}): max abs err = {err}"


if __name__ == "__main__":
    key = jax.random.PRNGKey(0)
    k_param, k_x, k_c1, k_c2, k_c3 = jax.random.split(key, 5)

    params = build_unet_params(k_param)

    # Input must survive 5 max-pools: 32x32 spatial, batch=1, 3 channels (NCHW).
    x = jax.random.normal(k_x, (1, 3, 32, 32), jnp.float32)

    # Sanity-check the fused conv kernel on three representative layer shapes.
    _check_conv(k_c1, 32, 32, 3, params["enc_0"][0], 3, "relu", "enc0.conv1")
    _check_conv(k_c2, 4, 4, 128, params["enc_3"][0], 3, "relu", "enc3.conv1")
    _check_conv(k_c3, 32, 32, 32, params["last"], 1, "sigmoid", "last")

    out = jax.jit(unet_forward)(x, params)
    out = jax.block_until_ready(out)
    assert out.shape == (1, 3, 32, 32)
    assert bool(jnp.all(jnp.isfinite(out)))
    print("KERNEL_OK")
</pallas_src>

<mosaic_0001>
module attributes {stable_mosaic.version = 11 : i64} {
  func.func @conv_bn_act_kernel(%arg0: i32, %arg1: i32, %arg2: i32, %arg3: memref<1x34x40x3xf32, #tpu.memory_space<vmem>>, %arg4: memref<9x3x128xbf16, #tpu.memory_space<vmem>>, %arg5: memref<1x128xf32, #tpu.memory_space<vmem>>, %arg6: memref<1x128xf32, #tpu.memory_space<vmem>>, %arg7: memref<1x4x32x128xf32, #tpu.memory_space<vmem>>) attributes {dimension_semantics = [#tpu.dimension_semantics<parallel>, #tpu.dimension_semantics<parallel>, #tpu.dimension_semantics<arbitrary>], iteration_bounds = array<i64: 1, 8, 1>, scalar_prefetch = 0 : i64, scratch_operands = 0 : i64, tpu.core_type = #tpu.core_type<tc>, window_params = [{transform_indices = @transform_0, window_bounds = array<i64: 1, 34, 40, 3>}, {transform_indices = @transform_1, window_bounds = array<i64: 9, 3, 128>}, {transform_indices = @transform_2, window_bounds = array<i64: 1, 128>}, {transform_indices = @transform_3, window_bounds = array<i64: 1, 128>}, {transform_indices = @transform_4, window_bounds = array<i64: 1, 4, 32, 128>}]} {
    %cst = arith.constant 0.000000e+00 : f32
    %0 = vector.broadcast %cst : f32 to vector<160x128xf32>
    %c4_i32 = arith.constant 4 : i32
    %1 = arith.muli %arg1, %c4_i32 : i32
    %c0_i32 = arith.constant 0 : i32
    %2 = arith.addi %1, %c0_i32 : i32
    %c0 = arith.constant 0 : index
    %3 = arith.index_cast %2 : i32 to index
    %c0_0 = arith.constant 0 : index
    %c0_1 = arith.constant 0 : index
    %4 = vector.load %arg3[%c0, %3, %c0_0, %c0_1] : memref<1x34x40x3xf32, #tpu.memory_space<vmem>>, vector<1x4x40x3xf32>
    %5 = vector.shape_cast %4 : vector<1x4x40x3xf32> to vector<4x40x3xf32>
    %6 = vector.shape_cast %5 : vector<4x40x3xf32> to vector<160x3xf32>
    %7 = arith.truncf %6 : vector<160x3xf32> to vector<160x3xbf16>
    %c0_2 = arith.constant 0 : index
    %c0_3 = arith.constant 0 : index
    %c0_4 = arith.constant 0 : index
    %8 = vector.load %arg4[%c0_2, %c0_3, %c0_4] : memref<9x3x128xbf16, #tpu.memory_space<vmem>>, vector<1x3x128xbf16>
    %9 = vector.shape_cast %8 : vector<1x3x128xbf16> to vector<3x128xbf16>
    %cst_5 = arith.constant dense<0.000000e+00> : vector<160x128xf32>
    %10 = tpu.matmul %7, %9, %cst_5 {dimension_numbers = #tpu.dot_dimension_numbers<[1], [0], [0], [1], [0, 0, 1, 1], [], []>} : vector<160x3xbf16>, vector<3x128xbf16>, vector<160x128xf32> -> vector<160x128xf32>
    %11 = arith.addf %0, %10 : vector<160x128xf32>
    %c1 = arith.constant 1 : index
    %c0_6 = arith.constant 0 : index
    %c0_7 = arith.constant 0 : index
    %12 = vector.load %arg4[%c1, %c0_6, %c0_7] : memref<9x3x128xbf16, #tpu.memory_space<vmem>>, vector<1x3x128xbf16>
    %13 = vector.shape_cast %12 : vector<1x3x128xbf16> to vector<3x128xbf16>
    %cst_8 = arith.constant dense<0.000000e+00> : vector<160x128xf32>
    %14 = tpu.matmul %7, %13, %cst_8 {dimension_numbers = #tpu.dot_dimension_numbers<[1], [0], [0], [1], [0, 0, 1, 1], [], []>} : vector<160x3xbf16>, vector<3x128xbf16>, vector<160x128xf32> -> vector<160x128xf32>
    %c159_i32 = arith.constant 159 : i32
    %15 = tpu.dynamic_rotate %14 by %c159_i32 dim 0 : vector<160x128xf32>, i32 -> vector<160x128xf32>
    %16 = arith.addf %11, %15 : vector<160x128xf32>
    %c2 = arith.constant 2 : index
    %c0_9 = arith.constant 0 : index
    %c0_10 = arith.constant 0 : index
    %17 = vector.load %arg4[%c2, %c0_9, %c0_10] : memref<9x3x128xbf16, #tpu.memory_space<vmem>>, vector<1x3x128xbf16>
    %18 = vector.shape_cast %17 : vector<1x3x128xbf16> to vector<3x128xbf16>
    %cst_11 = arith.constant dense<0.000000e+00> : vector<160x128xf32>
    %19 = tpu.matmul %7, %18, %cst_11 {dimension_numbers = #tpu.dot_dimension_numbers<[1], [0], [0], [1], [0, 0, 1, 1], [], []>} : vector<160x3xbf16>, vector<3x128xbf16>, vector<160x128xf32> -> vector<160x128xf32>
    %c158_i32 = arith.constant 158 : i32
    %20 = tpu.dynamic_rotate %19 by %c158_i32 dim 0 : vector<160x128xf32>, i32 -> vector<160x128xf32>
    %21 = arith.addf %16, %20 : vector<160x128xf32>
    %c4_i32_12 = arith.constant 4 : i32
    %22 = arith.muli %arg1, %c4_i32_12 : i32
    %c1_i32 = arith.constant 1 : i32
    %23 = arith.addi %22, %c1_i32 : i32
    %c0_13 = arith.constant 0 : index
    %24 = arith.index_cast %23 : i32 to index
    %c0_14 = arith.constant 0 : index
    %c0_15 = arith.constant 0 : index
    %25 = vector.load %arg3[%c0_13, %24, %c0_14, %c0_15] : memref<1x34x40x3xf32, #tpu.memory_space<vmem>>, vector<1x4x40x3xf32>
    %26 = vector.shape_cast %25 : vector<1x4x40x3xf32> to vector<4x40x3xf32>
    %27 = vector.shape_cast %26 : vector<4x40x3xf32> to vector<160x3xf32>
    %28 = arith.truncf %27 : vector<160x3xf32> to vector<160x3xbf16>
    %c3 = arith.constant 3 : index
    %c0_16 = arith.constant 0 : index
    %c0_17 = arith.constant 0 : index
    %29 = vector.load %arg4[%c3, %c0_16, %c0_17] : memref<9x3x128xbf16, #tpu.memory_space<vmem>>, vector<1x3x128xbf16>
    %30 = vector.shape_cast %29 : vector<1x3x128xbf16> to vector<3x128xbf16>
    %cst_18 = arith.constant dense<0.000000e+00> : vector<160x128xf32>
    %31 = tpu.matmul %28, %30, %cst_18 {dimension_numbers = #tpu.dot_dimension_numbers<[1], [0], [0], [1], [0, 0, 1, 1], [], []>} : vector<160x3xbf16>, vector<3x128xbf16>, vector<160x128xf32> -> vector<160x128xf32>
    %32 = arith.addf %21, %31 : vector<160x128xf32>
    %c4 = arith.constant 4 : index
    %c0_19 = arith.constant 0 : index
    %c0_20 = arith.constant 0 : index
    %33 = vector.load %arg4[%c4, %c0_19, %c0_20] : memref<9x3x128xbf16, #tpu.memory_space<vmem>>, vector<1x3x128xbf16>
    %34 = vector.shape_cast %33 : vector<1x3x128xbf16> to vector<3x128xbf16>
    %cst_21 = arith.constant dense<0.000000e+00> : vector<160x128xf32>
    %35 = tpu.matmul %28, %34, %cst_21 {dimension_numbers = #tpu.dot_dimension_numbers<[1], [0], [0], [1], [0, 0, 1, 1], [], []>} : vector<160x3xbf16>, vector<3x128xbf16>, vector<160x128xf32> -> vector<160x128xf32>
    %c159_i32_22 = arith.constant 159 : i32
    %36 = tpu.dynamic_rotate %35 by %c159_i32_22 dim 0 : vector<160x128xf32>, i32 -> vector<160x128xf32>
    %37 = arith.addf %32, %36 : vector<160x128xf32>
    %c5 = arith.constant 5 : index
    %c0_23 = arith.constant 0 : index
    %c0_24 = arith.constant 0 : index
    %38 = vector.load %arg4[%c5, %c0_23, %c0_24] : memref<9x3x128xbf16, #tpu.memory_space<vmem>>, vector<1x3x128xbf16>
    %39 = vector.shape_cast %38 : vector<1x3x128xbf16> to vector<3x128xbf16>
    %cst_25 = arith.constant dense<0.000000e+00> : vector<160x128xf32>
    %40 = tpu.matmul %28, %39, %cst_25 {dimension_numbers = #tpu.dot_dimension_numbers<[1], [0], [0], [1], [0, 0, 1, 1], [], []>} : vector<160x3xbf16>, vector<3x128xbf16>, vector<160x128xf32> -> vector<160x128xf32>
    %c158_i32_26 = arith.constant 158 : i32
    %41 = tpu.dynamic_rotate %40 by %c158_i32_26 dim 0 : vector<160x128xf32>, i32 -> vector<160x128xf32>
    %42 = arith.addf %37, %41 : vector<160x128xf32>
    %c4_i32_27 = arith.constant 4 : i32
    %43 = arith.muli %arg1, %c4_i32_27 : i32
    %c2_i32 = arith.constant 2 : i32
    %44 = arith.addi %43, %c2_i32 : i32
    %c0_28 = arith.constant 0 : index
    %45 = arith.index_cast %44 : i32 to index
    %c0_29 = arith.constant 0 : index
    %c0_30 = arith.constant 0 : index
    %46 = vector.load %arg3[%c0_28, %45, %c0_29, %c0_30] : memref<1x34x40x3xf32, #tpu.memory_space<vmem>>, vector<1x4x40x3xf32>
    %47 = vector.shape_cast %46 : vector<1x4x40x3xf32> to vector<4x40x3xf32>
    %48 = vector.shape_cast %47 : vector<4x40x3xf32> to vector<160x3xf32>
    %49 = arith.truncf %48 : vector<160x3xf32> to vector<160x3xbf16>
    %c6 = arith.constant 6 : index
    %c0_31 = arith.constant 0 : index
    %c0_32 = arith.constant 0 : index
    %50 = vector.load %arg4[%c6, %c0_31, %c0_32] : memref<9x3x128xbf16, #tpu.memory_space<vmem>>, vector<1x3x128xbf16>
    %51 = vector.shape_cast %50 : vector<1x3x128xbf16> to vector<3x128xbf16>
    %cst_33 = arith.constant dense<0.000000e+00> : vector<160x128xf32>
    %52 = tpu.matmul %49, %51, %cst_33 {dimension_numbers = #tpu.dot_dimension_numbers<[1], [0], [0], [1], [0, 0, 1, 1], [], []>} : vector<160x3xbf16>, vector<3x128xbf16>, vector<160x128xf32> -> vector<160x128xf32>
    %53 = arith.addf %42, %52 : vector<160x128xf32>
    %c7 = arith.constant 7 : index
    %c0_34 = arith.constant 0 : index
    %c0_35 = arith.constant 0 : index
    %54 = vector.load %arg4[%c7, %c0_34, %c0_35] : memref<9x3x128xbf16, #tpu.memory_space<vmem>>, vector<1x3x128xbf16>
    %55 = vector.shape_cast %54 : vector<1x3x128xbf16> to vector<3x128xbf16>
    %cst_36 = arith.constant dense<0.000000e+00> : vector<160x128xf32>
    %56 = tpu.matmul %49, %55, %cst_36 {dimension_numbers = #tpu.dot_dimension_numbers<[1], [0], [0], [1], [0, 0, 1, 1], [], []>} : vector<160x3xbf16>, vector<3x128xbf16>, vector<160x128xf32> -> vector<160x128xf32>
    %c159_i32_37 = arith.constant 159 : i32
    %57 = tpu.dynamic_rotate %56 by %c159_i32_37 dim 0 : vector<160x128xf32>, i32 -> vector<160x128xf32>
    %58 = arith.addf %53, %57 : vector<160x128xf32>
    %c8 = arith.constant 8 : index
    %c0_38 = arith.constant 0 : index
    %c0_39 = arith.constant 0 : index
    %59 = vector.load %arg4[%c8, %c0_38, %c0_39] : memref<9x3x128xbf16, #tpu.memory_space<vmem>>, vector<1x3x128xbf16>
    %60 = vector.shape_cast %59 : vector<1x3x128xbf16> to vector<3x128xbf16>
    %cst_40 = arith.constant dense<0.000000e+00> : vector<160x128xf32>
    %61 = tpu.matmul %49, %60, %cst_40 {dimension_numbers = #tpu.dot_dimension_numbers<[1], [0], [0], [1], [0, 0, 1, 1], [], []>} : vector<160x3xbf16>, vector<3x128xbf16>, vector<160x128xf32> -> vector<160x128xf32>
    %c158_i32_41 = arith.constant 158 : i32
    %62 = tpu.dynamic_rotate %61 by %c158_i32_41 dim 0 : vector<160x128xf32>, i32 -> vector<160x128xf32>
    %63 = arith.addf %58, %62 : vector<160x128xf32>
    %c0_42 = arith.constant 0 : index
    %c0_43 = arith.constant 0 : index
    %64 = vector.load %arg5[%c0_42, %c0_43] : memref<1x128xf32, #tpu.memory_space<vmem>>, vector<1x128xf32>
    %65 = vector.broadcast %64 : vector<1x128xf32> to vector<160x128xf32>
    %66 = arith.mulf %63, %65 : vector<160x128xf32>
    %c0_44 = arith.constant 0 : index
    %c0_45 = arith.constant 0 : index
    %67 = vector.load %arg6[%c0_44, %c0_45] : memref<1x128xf32, #tpu.memory_space<vmem>>, vector<1x128xf32>
    %68 = vector.broadcast %67 : vector<1x128xf32> to vector<160x128xf32>
    %69 = arith.addf %66, %68 : vector<160x128xf32>
    %cst_46 = arith.constant 0.000000e+00 : f32
    %70 = vector.broadcast %cst_46 : f32 to vector<160x128xf32>
    %71 = arith.maximumf %69, %70 : vector<160x128xf32>
    %72 = vector.shape_cast %71 : vector<160x128xf32> to vector<4x40x128xf32>
    %73 = vector.extract_strided_slice %72 {offsets = [0, 0, 0], sizes = [4, 32, 128], strides = [1, 1, 1]} : vector<4x40x128xf32> to vector<4x32x128xf32>
    %74 = vector.shape_cast %73 : vector<4x32x128xf32> to vector<1x4x32x128xf32>
    %c0_47 = arith.constant 0 : index
    %c0_48 = arith.constant 0 : index
    %c0_49 = arith.constant 0 : index
    %c0_50 = arith.constant 0 : index
    %75 = vector.load %arg7[%c0_47, %c0_48, %c0_49, %c0_50] : memref<1x4x32x128xf32, #tpu.memory_space<vmem>>, vector<1x4x32x128xf32>
    tpu.vector_store %arg7[%c0_47, %c0_48, %c0_49, %c0_50], %74 {strides = array<i32>} : memref<1x4x32x128xf32, #tpu.memory_space<vmem>>, vector<1x4x32x128xf32>,
    return
  }
  func.func @transform_0(%arg0: i32, %arg1: i32, %arg2: i32) -> (i32, i32, i32, i32) {
    %c0_i32 = arith.constant 0 : i32
    %c0_i32_0 = arith.constant 0 : i32
    %c0_i32_1 = arith.constant 0 : i32
    %c0_i32_2 = arith.constant 0 : i32
    return %arg2, %c0_i32, %c0_i32_0, %c0_i32_1 : i32, i32, i32, i32
  }
  func.func @transform_1(%arg0: i32, %arg1: i32, %arg2: i32) -> (i32, i32, i32) {
    %c0_i32 = arith.constant 0 : i32
    %c0_i32_0 = arith.constant 0 : i32
    %c0_i32_1 = arith.constant 0 : i32
    return %c0_i32, %c0_i32_0, %arg0 : i32, i32, i32
  }
  func.func @transform_2(%arg0: i32, %arg1: i32, %arg2: i32) -> (i32, i32) {
    %c0_i32 = arith.constant 0 : i32
    %c0_i32_0 = arith.constant 0 : i32
    return %c0_i32, %arg0 : i32, i32
  }
  func.func @transform_3(%arg0: i32, %arg1: i32, %arg2: i32) -> (i32, i32) {
    %c0_i32 = arith.constant 0 : i32
    %c0_i32_0 = arith.constant 0 : i32
    return %c0_i32, %arg0 : i32, i32
  }
  func.func @transform_4(%arg0: i32, %arg1: i32, %arg2: i32) -> (i32, i32, i32, i32) {
    %c0_i32 = arith.constant 0 : i32
    %c0_i32_0 = arith.constant 0 : i32
    return %arg2, %arg1, %c0_i32, %arg0 : i32, i32, i32, i32
  }
}

</mosaic_0001>

<llo_original>
// kernel: tpu_custom_call.1
$region0: #{tpu_custom_call.1}
  #allocation0 [shape = 'u32[]', space=smem, size = 0x4, offset = 0x4, fixed_abs, tag = 'smem constant byte address 0x4 - core index']
  #allocation1 [shape = 'u32[144,128]{1,0:T(1,128)}', space=vmem, size = 0x12000, scoped, tag = 'internal scratch']
  %s0 = inlined_call_operand.vmem [shape: f32[1,34,40,3], index: 0, kind: input, shape index: {}]
  %s1 = inlined_call_operand.vmem [shape: bf16[9,3,128], index: 1, kind: input, shape index: {}]
  %s2 = inlined_call_operand.vmem [shape: f32[1,128], index: 2, kind: input, shape index: {}]
  %s3 = inlined_call_operand.vmem [shape: f32[1,128], index: 3, kind: input, shape index: {}]
  %s4 = inlined_call_operand.hbm [shape: f32[1,32,32,128], index: 4, kind: output, shape index: {}]
  %s5 = sld [smem:[#allocation0]]
  $region49: #{tpu_custom_call.1} parent=0
    _
  %s7 = ssub.s32 1, %s5
  %s8 = scalar_select 0, %s7, %s5
  $region1: #{tpu_custom_call.1} parent=0
    #allocation2 [shape = 'u8[131072]{0}', space=vmem, size = 0x20000, scoped, tag = 'output window, operand 0']
    #allocation3 [shape = 's32[2]{0}', space=sflag, size = 0x8, scoped, tag = 'scoped memory for tpu_custom_call.1']
    %9 = vsyncpa [#allocation3], 0
    %s10 = scalar_lea.sflag [#allocation3], 1
    %11 = vsyncpa %s10, 0
    loop: start=0, step=1, limit=10
    $region2: #{tpu_custom_call.1} parent=1 // loop_pre_header
      _
    $region3: #{tpu_custom_call.1} parent=1 // loop_header
      %s13 = sphi 0, %s17
      %p14 = scmp.ge.s32.totalorder %s13, 10
      %s20 = sphi 0, %s39
      %s21 = sphi 0, %s35
      %s22 = sphi 0, %s31
      %s23 = sphi 0, %s20
      %s24 = sphi 0, %s21
      %s25 = sphi 0, %s22
      %s26 = sphi 0, %s23
      %s27 = sphi 0, %s24
      %s28 = sphi 0, %s25
      %s42 = sphi 0, %s44
      %s45 = sphi 0, %s42
      %s46 = sphi 0, %s45
      %s62 = sphi 0, %s46
      %s68 = sphi 0, %s70
      %s71 = sphi 0, %s68
      %s72 = sphi 0, %s71
      %s88 = sphi 0, %s72
      %s94 = sphi 0, %s96
      %s97 = sphi 0, %s94
      %s98 = sphi 0, %s97
      %s114 = sphi 0, %s98
      %s120 = sphi 0, %s122
      %s123 = sphi 0, %s120
      %s124 = sphi 0, %s123
      %s140 = sphi 0, %s124
      %s150 = sphi 0, %s152
      %s153 = sphi 0, %s150
      %s154 = sphi 0, %s153
      %s170 = sphi 0, %s154
    $region4: #{tpu_custom_call.1} parent=1 // loop_header_branch
      %16 = sbr.rel (%p14) target = $region8
    $region5: #{tpu_custom_call.1} parent=1 // loop_body
      %s18 = ssub.s32 %s13, 1
      %s19 = ssub.s32 %s13, 2
      %s29 = sadd.s32 1, %s22
      %p30 = scmp.ge.s32.totalorder %s29, 1
      %s31 = scalar_select %p30, 0, %s29
      %s32 = sadd.s32 1, %s21
      %s33 = scalar_select %p30, %s32, %s21
      %p34 = scmp.ge.s32.totalorder %s33, 8
      %s35 = scalar_select %p34, 0, %s33
      %s36 = sadd.s32 1, %s20
      %s37 = scalar_select %p34, %s36, %s20
      %p38 = scmp.ge.s32.totalorder %s37, 1
      %s39 = scalar_select %p38, 0, %s37
      %s40 = ssub.s32 %s22, %s31
      %p41 = scmp.eq.s32.totalorder %s40, 0
      %s43 = sadd.s32 %s42, 1
      %s44 = scalar_select %p41, %s42, %s43
      %p47 = pneg %p41
      %p48 = scmp.eq.s32.totalorder %s13, 7
      %p49 = por %p47, %p48
      %p50 = scmp.ne.s32.totalorder %s42, %s45
      %p51 = scmp.eq.s32.totalorder %s13, 0
      %p52 = por %p50, %p51
      %p53 = scmp.ne.s32.totalorder %s42, %s45
      %p54 = scmp.eq.s32.totalorder %s18, 7
      %p55 = por %p53, %p54
      %p56 = scmp.ne.s32.totalorder %s45, %s46
      %p57 = scmp.eq.s32.totalorder %s18, 0
      %p58 = por %p56, %p57
      %p59 = scmp.ne.s32.totalorder %s45, %s46
      %p60 = scmp.eq.s32.totalorder %s19, 7
      %p61 = por %p59, %p60
      %p63 = scmp.ne.s32.totalorder %s46, %s62
      %p64 = scmp.eq.s32.totalorder %s19, 0
      %p65 = por %p63, %p64
      %s66 = ssub.s32 %s20, %s39
      %p67 = scmp.eq.s32.totalorder %s66, 0
      %s69 = sadd.s32 %s68, 1
      %s70 = scalar_select %p67, %s68, %s69
      %p73 = pneg %p67
      %p74 = scmp.eq.s32.totalorder %s13, 7
      %p75 = por %p73, %p74
      %p76 = scmp.ne.s32.totalorder %s68, %s71
      %p77 = scmp.eq.s32.totalorder %s13, 0
      %p78 = por %p76, %p77
      %p79 = scmp.ne.s32.totalorder %s68, %s71
      %p80 = scmp.eq.s32.totalorder %s18, 7
      %p81 = por %p79, %p80
      %p82 = scmp.ne.s32.totalorder %s71, %s72
      %p83 = scmp.eq.s32.totalorder %s18, 0
      %p84 = por %p82, %p83
      %p85 = scmp.ne.s32.totalorder %s71, %s72
      %p86 = scmp.eq.s32.totalorder %s19, 7
      %p87 = por %p85, %p86
      %p89 = scmp.ne.s32.totalorder %s72, %s88
      %p90 = scmp.eq.s32.totalorder %s19, 0
      %p91 = por %p89, %p90
      %s92 = ssub.s32 %s20, %s39
      %p93 = scmp.eq.s32.totalorder %s92, 0
      %s95 = sadd.s32 %s94, 1
      %s96 = scalar_select %p93, %s94, %s95
      %p99 = pneg %p93
      %p100 = scmp.eq.s32.totalorder %s13, 7
      %p101 = por %p99, %p100
      %p102 = scmp.ne.s32.totalorder %s94, %s97
      %p103 = scmp.eq.s32.totalorder %s13, 0
      %p104 = por %p102, %p103
      %p105 = scmp.ne.s32.totalorder %s94, %s97
      %p106 = scmp.eq.s32.totalorder %s18, 7
      %p107 = por %p105, %p106
      %p108 = scmp.ne.s32.totalorder %s97, %s98
      %p109 = scmp.eq.s32.totalorder %s18, 0
      %p110 = por %p108, %p109
      %p111 = scmp.ne.s32.totalorder %s97, %s98
      %p112 = scmp.eq.s32.totalorder %s19, 7
      %p113 = por %p111, %p112
      %p115 = scmp.ne.s32.totalorder %s98, %s114
      %p116 = scmp.eq.s32.totalorder %s19, 0
      %p117 = por %p115, %p116
      %s118 = ssub.s32 %s20, %s39
      %p119 = scmp.eq.s32.totalorder %s118, 0
      %s121 = sadd.s32 %s120, 1
      %s122 = scalar_select %p119, %s120, %s121
      %p125 = pneg %p119
      %p126 = scmp.eq.s32.totalorder %s13, 7
      %p127 = por %p125, %p126
      %p128 = scmp.ne.s32.totalorder %s120, %s123
      %p129 = scmp.eq.s32.totalorder %s13, 0
      %p130 = por %p128, %p129
      %p131 = scmp.ne.s32.totalorder %s120, %s123
      %p132 = scmp.eq.s32.totalorder %s18, 7
      %p133 = por %p131, %p132
      %p134 = scmp.ne.s32.totalorder %s123, %s124
      %p135 = scmp.eq.s32.totalorder %s18, 0
      %p136 = por %p134, %p135
      %p137 = scmp.ne.s32.totalorder %s123, %s124
      %p138 = scmp.eq.s32.totalorder %s19, 7
      %p139 = por %p137, %p138
      %p141 = scmp.ne.s32.totalorder %s124, %s140
      %p142 = scmp.eq.s32.totalorder %s19, 0
      %p143 = por %p141, %p142
      %s144 = ssub.s32 %s22, %s31
      %s145 = ssub.s32 %s21, %s35
      %s146 = sor.u32 %s144, %s145
      %s147 = ssub.s32 %s20, %s39
      %s148 = sor.u32 %s146, %s147
      %p149 = scmp.eq.s32.totalorder %s148, 0
      %s151 = sadd.s32 %s150, 1
      %s152 = scalar_select %p149, %s150, %s151
      %p155 = pneg %p149
      %p156 = scmp.eq.s32.totalorder %s13, 7
      %p157 = por %p155, %p156
      %p158 = scmp.ne.s32.totalorder %s150, %s153
      %p159 = scmp.eq.s32.totalorder %s13, 0
      %p160 = por %p158, %p159
      %p161 = scmp.ne.s32.totalorder %s150, %s153
      %p162 = scmp.eq.s32.totalorder %s18, 7
      %p163 = por %p161, %p162
      %p164 = scmp.ne.s32.totalorder %s153, %s154
      %p165 = scmp.eq.s32.totalorder %s18, 0
      %p166 = por %p164, %p165
      %p167 = scmp.ne.s32.totalorder %s153, %s154
      %p168 = scmp.eq.s32.totalorder %s19, 7
      %p169 = por %p167, %p168
      %p171 = scmp.ne.s32.totalorder %s154, %s170
      %p172 = scmp.eq.s32.totalorder %s19, 0
      %p173 = por %p171, %p172
      %p174 = scmp.le.s32.totalorder 1, %s13
      %p175 = scmp.lt.s32.totalorder %s13, 9
      %p176 = pnand %p174, %p175
      %p177 = pneg %p176
      // Predicated region
      $region9: #{tpu_custom_call.1} parent=5 // pred_check
        _
      $region10: #{tpu_custom_call.1} parent=5 // pred_check_branch
        %179 = sbr.rel (%p176) target = $region12
      $region11: #{tpu_custom_call.1} parent=5 // pred_region
        %s180 = ssub.s32 %s13, 1
        // Predicated region
        $region13: #{tpu_custom_call.1} parent=11 // pred_check
          %p181 = pneg %p58
        $region14: #{tpu_custom_call.1} parent=11 // pred_check_branch
          %183 = sbr.rel (%p181) target = $region16
        $region15: #{tpu_custom_call.1} parent=11 // pred_region
          %p184 = scmp.lt.s32.totalorder %s25, 0
          %s185 = scalar_select %p184, %s25, 0
          %s186 = smul.addr %s185, 170
          %s187 = smul.addr %s186, 8
          %s188 = scalar_lea.vmem %s0, %s187
        $region16: #{tpu_custom_call.1} parent=11 // pred_fallthru
          _
        // Predicated region
        $region17: #{tpu_custom_call.1} parent=11 // pred_check
          %p189 = pneg %p84
        $region18: #{tpu_custom_call.1} parent=11 // pred_check_branch
          %191 = sbr.rel (%p189) target = $region20
        $region19: #{tpu_custom_call.1} parent=11 // pred_region
          %p192 = scmp.lt.s32.totalorder %s23, 0
          %s193 = scalar_select %p192, %s23, 0
          %s194 = smul.addr %s193, 2
          %s195 = scalar_lea.vmem %s1, %s194
        $region20: #{tpu_custom_call.1} parent=11 // pred_fallthru
          _
        // Predicated region
        $region21: #{tpu_custom_call.1} parent=11 // pred_check
          %p196 = pneg %p110
        $region22: #{tpu_custom_call.1} parent=11 // pred_check_branch
          %198 = sbr.rel (%p196) target = $region24
        $region23: #{tpu_custom_call.1} parent=11 // pred_region
          %p199 = scmp.lt.s32.totalorder %s23, 0
          %s200 = scalar_select %p199, %s23, 0
          %s201 = scalar_lea.vmem %s2, %s200
        $region24: #{tpu_custom_call.1} parent=11 // pred_fallthru
          _
        // Predicated region
        $region25: #{tpu_custom_call.1} parent=11 // pred_check
          %p202 = pneg %p136
        $region26: #{tpu_custom_call.1} parent=11 // pred_check_branch
          %204 = sbr.rel (%p202) target = $region28
        $region27: #{tpu_custom_call.1} parent=11 // pred_region
          %p205 = scmp.lt.s32.totalorder %s23, 0
          %s206 = scalar_select %p205, %s23, 0
          %s207 = scalar_lea.vmem %s3, %s206
        $region28: #{tpu_custom_call.1} parent=11 // pred_fallthru
          _
      $region12: #{tpu_custom_call.1} parent=5 // pred_fallthru
        _
      %p208 = scmp.lt.s32.totalorder %s13, 8
      // Predicated region
      $region29: #{tpu_custom_call.1} parent=5 // pred_check
        %p209 = pneg %p208
      $region30: #{tpu_custom_call.1} parent=5 // pred_check_branch
        %211 = sbr.rel (%p209) target = $region32
      $region31: #{tpu_custom_call.1} parent=5 // pred_region
        _
      $region32: #{tpu_custom_call.1} parent=5 // pred_fallthru
        _
      %p212 = scmp.le.s32.totalorder 1, %s13
      %p213 = scmp.lt.s32.totalorder %s13, 9
      %p214 = pnand %p212, %p213
      %p215 = pneg %p214
      // Predicated region
      $region33: #{tpu_custom_call.1} parent=5 // pred_check
        _
      $region34: #{tpu_custom_call.1} parent=5 // pred_check_branch
        %217 = sbr.rel (%p214) target = $region36
      $region35: #{tpu_custom_call.1} parent=5 // pred_region
        %s218 = ssub.s32 %s13, 1
        %p219 = scmp.lt.s32.totalorder %s25, 0
        %s220 = scalar_select %p219, %s25, 0
        %s221 = smul.addr %s220, 170
        %s222 = smul.addr %s221, 8
        %s223 = scalar_lea.vmem %s0, %s222
        %p224 = pneg %p58
        %p225 = pneg %p55
        %p226 = scmp.lt.s32.totalorder %s23, 0
        %s227 = scalar_select %p226, %s23, 0
        %s228 = smul.addr %s227, 2
        %s229 = scalar_lea.vmem %s1, %s228
        %p230 = pneg %p84
        %p231 = pneg %p81
        %p232 = scmp.lt.s32.totalorder %s23, 0
        %s233 = scalar_select %p232, %s23, 0
        %s234 = scalar_lea.vmem %s2, %s233
        %p235 = pneg %p110
        %p236 = pneg %p107
        %p237 = scmp.lt.s32.totalorder %s23, 0
        %s238 = scalar_select %p237, %s23, 0
        %s239 = scalar_lea.vmem %s3, %s238
        %p240 = pneg %p136
        %p241 = pneg %p133
        %p242 = pneg %p166
        %p243 = pneg %p163
        %s244 = sand.u32 %s153, 1
        %s245 = scalar_lea.sflag [#allocation3], %s244
        %s246 = sand.u32 %s153, 1
        %s247 = smul.addr %s246, 128
        %s248 = scalar_lea.vmem [#allocation2], %s247
        %p249 = scmp.lt.s32.totalorder %s25, 0
        %s250 = scalar_select %p249, %s25, 0
        %s251 = smul.addr %s250, 170
        %s252 = smul.addr %s251, 8
        %s253 = scalar_lea.vmem %s0, %s252
        %p254 = scmp.lt.s32.totalorder %s23, 0
        %s255 = scalar_select %p254, %s23, 0
        %s256 = smul.addr %s255, 2
        %s257 = scalar_lea.vmem %s1, %s256
        %p258 = scmp.lt.s32.totalorder %s23, 0
        %s259 = scalar_select %p258, %s23, 0
        %s260 = scalar_lea.vmem %s2, %s259
        %p261 = scmp.lt.s32.totalorder %s23, 0
        %s262 = scalar_select %p261, %s23, 0
        %s263 = scalar_lea.vmem %s3, %s262
        %s264 = smul.u32 4, %s24
        %s266 = smul.u32 %s24, 4
        %s267 = smul.u32 %s266, 40
        %s268 = scalar_lea.vmem %s253, %s267
        %v269 = vld [vmem:[%s268] sm:$0xff]
        %v270 = vld [vmem:[%s268 + $0x8] sm:$0xff]
        %v271 = vld [vmem:[%s268 + $0x10] sm:$0xff]
        %v272 = vld [vmem:[%s268 + $0x18] sm:$0xff]
        %v273 = vld [vmem:[%s268 + $0x20] sm:$0xff]
        %v274 = vld [vmem:[%s268 + $0x28] sm:$0xff]
        %v275 = vld [vmem:[%s268 + $0x30] sm:$0xff]
        %v276 = vld [vmem:[%s268 + $0x38] sm:$0xff]
        %v277 = vld [vmem:[%s268 + $0x40] sm:$0xff]
        %v278 = vld [vmem:[%s268 + $0x48] sm:$0xff]
        %v279 = vld [vmem:[%s268 + $0x50] sm:$0xff]
        %v280 = vld [vmem:[%s268 + $0x58] sm:$0xff]
        %v281 = vld [vmem:[%s268 + $0x60] sm:$0xff]
        %v282 = vld [vmem:[%s268 + $0x68] sm:$0xff]
        %v283 = vld [vmem:[%s268 + $0x70] sm:$0xff]
        %v284 = vld [vmem:[%s268 + $0x78] sm:$0xff]
        %v285 = vld [vmem:[%s268 + $0x80] sm:$0xff]
        %v286 = vld [vmem:[%s268 + $0x88] sm:$0xff]
        %v287 = vld [vmem:[%s268 + $0x90] sm:$0xff]
        %v288 = vld [vmem:[%s268 + $0x98] sm:$0xff]
        %v289 = vpack.c.bf16 %v270, %v269
        %v290 = vpack.c.bf16 %v272, %v271
        %v291 = vpack.c.bf16 %v274, %v273
        %v292 = vpack.c.bf16 %v276, %v275
        %v293 = vpack.c.bf16 %v278, %v277
        %v294 = vpack.c.bf16 %v280, %v279
        %v295 = vpack.c.bf16 %v282, %v281
        %v296 = vpack.c.bf16 %v284, %v283
        %v297 = vpack.c.bf16 %v286, %v285
        %v298 = vpack.c.bf16 %v288, %v287
        %v299 = vld [vmem:[%s257] sm:$0x3]
        %s300 = scalar_lea.vmem %s257, 2
        %v301 = vld [vmem:[%s300] sm:$0x3]
        %vm302 = vcmask 23552
        %v304 = vsel %vm302, %v289, 0
        %v307 = vsel %vm302, %v290, 0
        %v310 = vsel %vm302, %v291, 0
        %v313 = vsel %vm302, %v292, 0
        %v316 = vsel %vm302, %v293, 0
        %v319 = vsel %vm302, %v294, 0
        %v322 = vsel %vm302, %v295, 0
        %v325 = vsel %vm302, %v296, 0
        %v328 = vsel %vm302, %v297, 0
        %v331 = vsel %vm302, %v298, 0
        %vm333 = vcmask 1040384
        %vm334 = vcmask 1041408
        %v335 = vsel %vm333, 4294967295, 65535
        %v336 = vsel %vm334, %v335, 0
        %v338 = vand.u32 %v301, %v336
        %340 = vmatprep.subr.bf16.mxu0 0
        %341 = vmatpush1.bf16.msra.mxu0 0
        %342 = vmatprep.subr.bf16.mxu0 0
        %343 = vmatpush1.bf16.msra.mxu0 0
        %344 = vmatprep.subr.bf16.mxu0 0
        %345 = vmatpush1.bf16.msra.mxu0 0
        %346 = vmatprep.subr.bf16.mxu0 0
        %347 = vmatpush1.bf16.msra.mxu0 0
        %348 = vmatprep.subr.bf16.mxu0 0
        %349 = vmatpush1.bf16.msra.mxu0 0
        %350 = vmatprep.subr.bf16.mxu0 0
        %351 = vmatpush1.bf16.msra.mxu0 0
        %352 = vmatprep.subr.bf16.mxu0 0
        %353 = vmatpush1.bf16.msra.mxu0 0
        %354 = vmatprep.subr.bf16.mxu0 0
        %355 = vmatpush1.bf16.msra.mxu0 %v338
        %356 = vmatprep.subr.bf16.mxu0 0
        %357 = vmatpush2.bf16.msra.mxu0 0
        %358 = vmatprep.subr.bf16.mxu0 0
        %359 = vmatpush2.bf16.msra.mxu0 0
        %360 = vmatprep.subr.bf16.mxu0 0
        %361 = vmatpush2.bf16.msra.mxu0 0
        %362 = vmatprep.subr.bf16.mxu0 0
        %363 = vmatpush2.bf16.msra.mxu0 0
        %364 = vmatprep.subr.bf16.mxu0 0
        %365 = vmatpush2.bf16.msra.mxu0 0
        %366 = vmatprep.subr.bf16.mxu0 0
        %367 = vmatpush2.bf16.msra.mxu0 0
        %368 = vmatprep.subr.bf16.mxu0 0
        %369 = vmatpush2.bf16.msra.mxu0 0
        %370 = vmatprep.subr.bf16.mxu0 0
        %371 = vmatpush2.bf16.msra.mxu0 0
        %372 = vmatprep.mubr.bf16.mxu0 0
        %373 = vmatmul.mubr.bf16.gmra.mxu0 %v304
        %v374 = vpop.f32.mrf.mxu0
        %v375 = vadd.f32 0.0, %v374
        %v376 = vpop.f32.mrf.mxu0
        %v377 = vpop.f32.mrf.mxu0
        %v378 = vadd.f32 0.0, %v377
        %v379 = vpop.f32.mrf.mxu0
        %380 = vmatprep.mubr.bf16.mxu0 0
        %381 = vmatmul.mubr.bf16.gmra.mxu0 %v307
        %v382 = vpop.f32.mrf.mxu0
        %v383 = vadd.f32 0.0, %v382
        %v384 = vpop.f32.mrf.mxu0
        %v385 = vpop.f32.mrf.mxu0
        %v386 = vadd.f32 0.0, %v385
        %v387 = vpop.f32.mrf.mxu0
        %388 = vmatprep.mubr.bf16.mxu0 0
        %389 = vmatmul.mubr.bf16.gmra.mxu0 %v310
        %v390 = vpop.f32.mrf.mxu0
        %v391 = vadd.f32 0.0, %v390
        %v392 = vpop.f32.mrf.mxu0
        %v393 = vpop.f32.mrf.mxu0
        %v394 = vadd.f32 0.0, %v393
        %v395 = vpop.f32.mrf.mxu0
        %396 = vmatprep.mubr.bf16.mxu0 0
        %397 = vmatmul.mubr.bf16.gmra.mxu0 %v313
        %v398 = vpop.f32.mrf.mxu0
        %v399 = vadd.f32 0.0, %v398
        %v400 = vpop.f32.mrf.mxu0
        %v401 = vpop.f32.mrf.mxu0
        %v402 = vadd.f32 0.0, %v401
        %v403 = vpop.f32.mrf.mxu0
        %404 = vmatprep.mubr.bf16.mxu0 0
        %405 = vmatmul.mubr.bf16.gmra.mxu0 %v316
        %v406 = vpop.f32.mrf.mxu0
        %v407 = vadd.f32 0.0, %v406
        %v408 = vpop.f32.mrf.mxu0
        %v409 = vpop.f32.mrf.mxu0
        %v410 = vadd.f32 0.0, %v409
        %v411 = vpop.f32.mrf.mxu0
        %412 = vmatprep.mubr.bf16.mxu0 0
        %413 = vmatmul.mubr.bf16.gmra.mxu0 %v319
        %v414 = vpop.f32.mrf.mxu0
        %v415 = vadd.f32 0.0, %v414
        %v416 = vpop.f32.mrf.mxu0
        %v417 = vpop.f32.mrf.mxu0
        %v418 = vadd.f32 0.0, %v417
        %v419 = vpop.f32.mrf.mxu0
        %420 = vmatprep.mubr.bf16.mxu0 0
        %421 = vmatmul.mubr.bf16.gmra.mxu0 %v322
        %v422 = vpop.f32.mrf.mxu0
        %v423 = vadd.f32 0.0, %v422
        %v424 = vpop.f32.mrf.mxu0
        %v425 = vpop.f32.mrf.mxu0
        %v426 = vadd.f32 0.0, %v425
        %v427 = vpop.f32.mrf.mxu0
        %428 = vmatprep.mubr.bf16.mxu0 0
        %429 = vmatmul.mubr.bf16.gmra.mxu0 %v325
        %v430 = vpop.f32.mrf.mxu0
        %v431 = vadd.f32 0.0, %v430
        %v432 = vpop.f32.mrf.mxu0
        %v433 = vpop.f32.mrf.mxu0
        %v434 = vadd.f32 0.0, %v433
        %v435 = vpop.f32.mrf.mxu0
        %436 = vmatprep.mubr.bf16.mxu0 0
        %437 = vmatmul.mubr.bf16.gmra.mxu0 %v328
        %v438 = vpop.f32.mrf.mxu0
        %v439 = vadd.f32 0.0, %v438
        %v440 = vpop.f32.mrf.mxu0
        %v441 = vpop.f32.mrf.mxu0
        %v442 = vadd.f32 0.0, %v441
        %v443 = vpop.f32.mrf.mxu0
        %444 = vmatprep.mubr.bf16.mxu0 0
        %445 = vmatmul.mubr.bf16.gmra.mxu0 %v331
        %v446 = vpop.f32.mrf.mxu0
        %v447 = vadd.f32 0.0, %v446
        %v448 = vpop.f32.mrf.mxu0
        %v449 = vpop.f32.mrf.mxu0
        %v450 = vadd.f32 0.0, %v449
        %v451 = vpop.f32.mrf.mxu0
        %452 = vdwg.mxu0
        %v453 = vrot.slane %v375, 1
        %v454 = vrot.slane %v378, 1
        %v455 = vrot.slane %v383, 1
        %v456 = vrot.slane %v386, 1
        %v457 = vrot.slane %v391, 1
        %v458 = vrot.slane %v394, 1
        %v459 = vrot.slane %v399, 1
        %v460 = vrot.slane %v402, 1
        %v461 = vrot.slane %v407, 1
        %v462 = vrot.slane %v410, 1
        %v463 = vrot.slane %v415, 1
        %v464 = vrot.slane %v418, 1
        %v465 = vrot.slane %v423, 1
        %v466 = vrot.slane %v426, 1
        %v467 = vrot.slane %v431, 1
        %v468 = vrot.slane %v434, 1
        %v469 = vrot.slane %v439, 1
        %v470 = vrot.slane %v442, 1
        %v471 = vrot.slane %v447, 1
        %v472 = vrot.slane %v450, 1
        %v473 = vlaneseq
        %v474 = vshrl.u32 %v473, 7
        %vm475 = vcmp.lt.s32.totalorder %v474, 7
        %v476 = vsel %vm475, %v471, %v472
        %v477 = vsel %vm475, %v470, %v471
        %v478 = vsel %vm475, %v469, %v470
        %v479 = vsel %vm475, %v468, %v469
        %v480 = vsel %vm475, %v466, %v467
        %v481 = vsel %vm475, %v465, %v466
        %v482 = vsel %vm475, %v464, %v465
        %v483 = vsel %vm475, %v463, %v464
        %v484 = vsel %vm475, %v461, %v462
        %v485 = vsel %vm475, %v460, %v461
        %v486 = vsel %vm475, %v459, %v460
        %v487 = vsel %vm475, %v458, %v459
        %v488 = vsel %vm475, %v456, %v457
        %v489 = vsel %vm475, %v455, %v456
        %v490 = vsel %vm475, %v454, %v455
        %v491 = vsel %vm475, %v453, %v454
        %v493 = vand.u32 %v299, %v336
        %495 = vmatprep.subr.bf16.mxu0 0
        %496 = vmatpush1.bf16.msra.mxu0 0
        %497 = vmatprep.subr.bf16.mxu0 0
        %498 = vmatpush1.bf16.msra.mxu0 0
        %499 = vmatprep.subr.bf16.mxu0 0
        %500 = vmatpush1.bf16.msra.mxu0 0
        %501 = vmatprep.subr.bf16.mxu0 0
        %502 = vmatpush1.bf16.msra.mxu0 0
        %503 = vmatprep.subr.bf16.mxu0 0
        %504 = vmatpush1.bf16.msra.mxu0 0
        %505 = vmatprep.subr.bf16.mxu0 0
        %506 = vmatpush1.bf16.msra.mxu0 0
        %507 = vmatprep.subr.bf16.mxu0 0
        %508 = vmatpush1.bf16.msra.mxu0 0
        %509 = vmatprep.subr.bf16.mxu0 0
        %510 = vmatpush1.bf16.msra.mxu0 %v493
        %511 = vmatprep.subr.bf16.mxu0 0
        %512 = vmatpush2.bf16.msra.mxu0 0
        %513 = vmatprep.subr.bf16.mxu0 0
        %514 = vmatpush2.bf16.msra.mxu0 0
        %515 = vmatprep.subr.bf16.mxu0 0
        %516 = vmatpush2.bf16.msra.mxu0 0
        %517 = vmatprep.subr.bf16.mxu0 0
        %518 = vmatpush2.bf16.msra.mxu0 0
        %519 = vmatprep.subr.bf16.mxu0 0
        %520 = vmatpush2.bf16.msra.mxu0 0
        %521 = vmatprep.subr.bf16.mxu0 0
        %522 = vmatpush2.bf16.msra.mxu0 0
        %523 = vmatprep.subr.bf16.mxu0 0
        %524 = vmatpush2.bf16.msra.mxu0 0
        %525 = vmatprep.subr.bf16.mxu0 0
        %526 = vmatpush2.bf16.msra.mxu0 0
        %527 = vmatprep.mubr.bf16.mxu0 0
        %528 = vmatmul.mubr.bf16.gmra.mxu0 %v304
        %v529 = vpop.f32.mrf.mxu0
        %v530 = vadd.f32 %v491, %v529
        %v531 = vpop.f32.mrf.mxu0
        %v532 = vpop.f32.mrf.mxu0
        %v533 = vadd.f32 %v490, %v532
        %v534 = vpop.f32.mrf.mxu0
        %535 = vmatprep.mubr.bf16.mxu0 0
        %536 = vmatmul.mubr.bf16.gmra.mxu0 %v307
        %v537 = vpop.f32.mrf.mxu0
        %v538 = vadd.f32 %v489, %v537
        %v539 = vpop.f32.mrf.mxu0
        %v540 = vpop.f32.mrf.mxu0
        %v541 = vadd.f32 %v488, %v540
        %v542 = vpop.f32.mrf.mxu0
        %543 = vmatprep.mubr.bf16.mxu0 0
        %544 = vmatmul.mubr.bf16.gmra.mxu0 %v310
        %v545 = vpop.f32.mrf.mxu0
        %v546 = vpop.f32.mrf.mxu0
        %v547 = vpop.f32.mrf.mxu0
        %v548 = vadd.f32 %v487, %v547
        %v549 = vpop.f32.mrf.mxu0
        %550 = vmatprep.mubr.bf16.mxu0 0
        %551 = vmatmul.mubr.bf16.gmra.mxu0 %v313
        %v552 = vpop.f32.mrf.mxu0
        %v553 = vadd.f32 %v486, %v552
        %v554 = vpop.f32.mrf.mxu0
        %v555 = vpop.f32.mrf.mxu0
        %v556 = vadd.f32 %v485, %v555
        %v557 = vpop.f32.mrf.mxu0
        %558 = vmatprep.mubr.bf16.mxu0 0
        %559 = vmatmul.mubr.bf16.gmra.mxu0 %v316
        %v560 = vpop.f32.mrf.mxu0
        %v561 = vadd.f32 %v484, %v560
        %v562 = vpop.f32.mrf.mxu0
        %v563 = vpop.f32.mrf.mxu0
        %v564 = vpop.f32.mrf.mxu0
        %565 = vmatprep.mubr.bf16.mxu0 0
        %566 = vmatmul.mubr.bf16.gmra.mxu0 %v319
        %v567 = vpop.f32.mrf.mxu0
        %v568 = vadd.f32 %v483, %v567
        %v569 = vpop.f32.mrf.mxu0
        %v570 = vpop.f32.mrf.mxu0
        %v571 = vadd.f32 %v482, %v570
        %v572 = vpop.f32.mrf.mxu0
        %573 = vmatprep.mubr.bf16.mxu0 0
        %574 = vmatmul.mubr.bf16.gmra.mxu0 %v322
        %v575 = vpop.f32.mrf.mxu0
        %v576 = vadd.f32 %v481, %v575
        %v577 = vpop.f32.mrf.mxu0
        %v578 = vpop.f32.mrf.mxu0
        %v579 = vadd.f32 %v480, %v578
        %v580 = vpop.f32.mrf.mxu0
        %581 = vmatprep.mubr.bf16.mxu0 0
        %582 = vmatmul.mubr.bf16.gmra.mxu0 %v325
        %v583 = vpop.f32.mrf.mxu0
        %v584 = vpop.f32.mrf.mxu0
        %v585 = vpop.f32.mrf.mxu0
        %v586 = vadd.f32 %v479, %v585
        %v587 = vpop.f32.mrf.mxu0
        %588 = vmatprep.mubr.bf16.mxu0 0
        %589 = vmatmul.mubr.bf16.gmra.mxu0 %v328
        %v590 = vpop.f32.mrf.mxu0
        %v591 = vadd.f32 %v478, %v590
        %v592 = vpop.f32.mrf.mxu0
        %v593 = vpop.f32.mrf.mxu0
        %v594 = vadd.f32 %v477, %v593
        %v595 = vpop.f32.mrf.mxu0
        %596 = vmatprep.mubr.bf16.mxu0 0
        %597 = vmatmul.mubr.bf16.gmra.mxu0 %v331
        %v598 = vpop.f32.mrf.mxu0
        %v599 = vadd.f32 %v476, %v598
        %v600 = vpop.f32.mrf.mxu0
        %v601 = vpop.f32.mrf.mxu0
        %v602 = vpop.f32.mrf.mxu0
        %603 = vdwg.mxu0
        %s604 = scalar_lea.vmem %s257, 4
        %v605 = vld [vmem:[%s604] sm:$0x3]
        %v607 = vand.u32 %v605, %v336
        %609 = vmatprep.subr.bf16.mxu0 0
        %610 = vmatpush1.bf16.msra.mxu0 0
        %611 = vmatprep.subr.bf16.mxu0 0
        %612 = vmatpush1.bf16.msra.mxu0 0
        %613 = vmatprep.subr.bf16.mxu0 0
        %614 = vmatpush1.bf16.msra.mxu0 0
        %615 = vmatprep.subr.bf16.mxu0 0
        %616 = vmatpush1.bf16.msra.mxu0 0
        %617 = vmatprep.subr.bf16.mxu0 0
        %618 = vmatpush1.bf16.msra.mxu0 0
        %619 = vmatprep.subr.bf16.mxu0 0
        %620 = vmatpush1.bf16.msra.mxu0 0
        %621 = vmatprep.subr.bf16.mxu0 0
        %622 = vmatpush1.bf16.msra.mxu0 0
        %623 = vmatprep.subr.bf16.mxu0 0
        %624 = vmatpush1.bf16.msra.mxu0 %v607
        %625 = vmatprep.subr.bf16.mxu0 0
        %626 = vmatpush2.bf16.msra.mxu0 0
        %627 = vmatprep.subr.bf16.mxu0 0
        %628 = vmatpush2.bf16.msra.mxu0 0
        %629 = vmatprep.subr.bf16.mxu0 0
        %630 = vmatpush2.bf16.msra.mxu0 0
        %631 = vmatprep.subr.bf16.mxu0 0
        %632 = vmatpush2.bf16.msra.mxu0 0
        %633 = vmatprep.subr.bf16.mxu0 0
        %634 = vmatpush2.bf16.msra.mxu0 0
        %635 = vmatprep.subr.bf16.mxu0 0
        %636 = vmatpush2.bf16.msra.mxu0 0
        %637 = vmatprep.subr.bf16.mxu0 0
        %638 = vmatpush2.bf16.msra.mxu0 0
        %639 = vmatprep.subr.bf16.mxu0 0
        %640 = vmatpush2.bf16.msra.mxu0 0
        %641 = vmatprep.mubr.bf16.mxu0 0
        %642 = vmatmul.mubr.bf16.gmra.mxu0 %v304
        %v643 = vpop.f32.mrf.mxu0
        %v644 = vadd.f32 0.0, %v643
        %v645 = vpop.f32.mrf.mxu0
        %v646 = vpop.f32.mrf.mxu0
        %v647 = vadd.f32 0.0, %v646
        %v648 = vpop.f32.mrf.mxu0
        %649 = vmatprep.mubr.bf16.mxu0 0
        %650 = vmatmul.mubr.bf16.gmra.mxu0 %v307
        %v651 = vpop.f32.mrf.mxu0
        %v652 = vadd.f32 0.0, %v651
        %v653 = vpop.f32.mrf.mxu0
        %v654 = vpop.f32.mrf.mxu0
        %v655 = vadd.f32 0.0, %v654
        %v656 = vpop.f32.mrf.mxu0
        %657 = vmatprep.mubr.bf16.mxu0 0
        %658 = vmatmul.mubr.bf16.gmra.mxu0 %v310
        %v659 = vpop.f32.mrf.mxu0
        %v660 = vadd.f32 0.0, %v659
        %v661 = vpop.f32.mrf.mxu0
        %v662 = vpop.f32.mrf.mxu0
        %v663 = vadd.f32 0.0, %v662
        %v664 = vpop.f32.mrf.mxu0
        %665 = vmatprep.mubr.bf16.mxu0 0
        %666 = vmatmul.mubr.bf16.gmra.mxu0 %v313
        %v667 = vpop.f32.mrf.mxu0
        %v668 = vadd.f32 0.0, %v667
        %v669 = vpop.f32.mrf.mxu0
        %v670 = vpop.f32.mrf.mxu0
        %v671 = vadd.f32 0.0, %v670
        %v672 = vpop.f32.mrf.mxu0
        %673 = vmatprep.mubr.bf16.mxu0 0
        %674 = vmatmul.mubr.bf16.gmra.mxu0 %v316
        %v675 = vpop.f32.mrf.mxu0
        %v676 = vadd.f32 0.0, %v675
        %v677 = vpop.f32.mrf.mxu0
        %v678 = vpop.f32.mrf.mxu0
        %v679 = vadd.f32 0.0, %v678
        %v680 = vpop.f32.mrf.mxu0
        %681 = vmatprep.mubr.bf16.mxu0 0
        %682 = vmatmul.mubr.bf16.gmra.mxu0 %v319
        %v683 = vpop.f32.mrf.mxu0
        %v684 = vadd.f32 0.0, %v683
        %v685 = vpop.f32.mrf.mxu0
        %v686 = vpop.f32.mrf.mxu0
        %v687 = vadd.f32 0.0, %v686
        %v688 = vpop.f32.mrf.mxu0
        %689 = vmatprep.mubr.bf16.mxu0 0
        %690 = vmatmul.mubr.bf16.gmra.mxu0 %v322
        %v691 = vpop.f32.mrf.mxu0
        %v692 = vadd.f32 0.0, %v691
        %v693 = vpop.f32.mrf.mxu0
        %v694 = vpop.f32.mrf.mxu0
        %v695 = vadd.f32 0.0, %v694
        %v696 = vpop.f32.mrf.mxu0
        %697 = vmatprep.mubr.bf16.mxu0 0
        %698 = vmatmul.mubr.bf16.gmra.mxu0 %v325
        %v699 = vpop.f32.mrf.mxu0
        %v700 = vadd.f32 0.0, %v699
        %v701 = vpop.f32.mrf.mxu0
        %v702 = vpop.f32.mrf.mxu0
        %v703 = vadd.f32 0.0, %v702
        %v704 = vpop.f32.mrf.mxu0
        %705 = vmatprep.mubr.bf16.mxu0 0
        %706 = vmatmul.mubr.bf16.gmra.mxu0 %v328
        %v707 = vpop.f32.mrf.mxu0
        %v708 = vadd.f32 0.0, %v707
        %v709 = vpop.f32.mrf.mxu0
        %v710 = vpop.f32.mrf.mxu0
        %v711 = vadd.f32 0.0, %v710
        %v712 = vpop.f32.mrf.mxu0
        %713 = vmatprep.mubr.bf16.mxu0 0
        %714 = vmatmul.mubr.bf16.gmra.mxu0 %v331
        %v715 = vpop.f32.mrf.mxu0
        %v716 = vadd.f32 0.0, %v715
        %v717 = vpop.f32.mrf.mxu0
        %v718 = vpop.f32.mrf.mxu0
        %v719 = vadd.f32 0.0, %v718
        %v720 = vpop.f32.mrf.mxu0
        %721 = vdwg.mxu0
        %v722 = vrot.slane %v644, 2
        %v723 = vrot.slane %v647, 2
        %v724 = vrot.slane %v652, 2
        %v725 = vrot.slane %v655, 2
        %v726 = vrot.slane %v660, 2
        %v727 = vrot.slane %v663, 2
        %v728 = vrot.slane %v668, 2
        %v729 = vrot.slane %v671, 2
        %v730 = vrot.slane %v676, 2
        %v731 = vrot.slane %v679, 2
        %v732 = vrot.slane %v684, 2
        %v733 = vrot.slane %v687, 2
        %v734 = vrot.slane %v692, 2
        %v735 = vrot.slane %v695, 2
        %v736 = vrot.slane %v700, 2
        %v737 = vrot.slane %v703, 2
        %v738 = vrot.slane %v708, 2
        %v739 = vrot.slane %v711, 2
        %v740 = vrot.slane %v716, 2
        %v741 = vrot.slane %v719, 2
        %vm742 = vcmp.lt.s32.totalorder %v474, 6
        %v743 = vsel %vm742, %v740, %v741
        %v744 = vsel %vm742, %v739, %v740
        %v745 = vsel %vm742, %v738, %v739
        %v746 = vsel %vm742, %v737, %v738
        %v747 = vsel %vm742, %v735, %v736
        %v748 = vsel %vm742, %v734, %v735
        %v749 = vsel %vm742, %v733, %v734
        %v750 = vsel %vm742, %v732, %v733
        %v751 = vsel %vm742, %v730, %v731
        %v752 = vsel %vm742, %v729, %v730
        %v753 = vsel %vm742, %v728, %v729
        %v754 = vsel %vm742, %v727, %v728
        %v755 = vsel %vm742, %v725, %v726
        %v756 = vsel %vm742, %v724, %v725
        %v757 = vsel %vm742, %v723, %v724
        %v758 = vsel %vm742, %v722, %v723
        %v759 = vadd.f32 %v530, %v758
        %v760 = vadd.f32 %v533, %v757
        %v761 = vadd.f32 %v538, %v756
        %v762 = vadd.f32 %v541, %v755
        %v763 = vadd.f32 %v548, %v754
        %v764 = vadd.f32 %v553, %v753
        %v765 = vadd.f32 %v556, %v752
        %v766 = vadd.f32 %v561, %v751
        %v767 = vadd.f32 %v568, %v750
        %v768 = vadd.f32 %v571, %v749
        %v769 = vadd.f32 %v576, %v748
        %v770 = vadd.f32 %v579, %v747
        %v771 = vadd.f32 %v586, %v746
        %v772 = vadd.f32 %v591, %v745
        %v773 = vadd.f32 %v594, %v744
        %v774 = vadd.f32 %v599, %v743
        %s775 = sadd.s32 %s266, 1
        %s776 = smul.u32 %s775, 40
        %s777 = scalar_lea.vmem %s253, %s776
        %v778 = vld [vmem:[%s777] sm:$0xff]
        %v779 = vld [vmem:[%s777 + $0x8] sm:$0xff]
        %v780 = vld [vmem:[%s777 + $0x10] sm:$0xff]
        %v781 = vld [vmem:[%s777 + $0x18] sm:$0xff]
        %v782 = vld [vmem:[%s777 + $0x20] sm:$0xff]
        %v783 = vld [vmem:[%s777 + $0x28] sm:$0xff]
        %v784 = vld [vmem:[%s777 + $0x30] sm:$0xff]
        %v785 = vld [vmem:[%s777 + $0x38] sm:$0xff]
        %v786 = vld [vmem:[%s777 + $0x40] sm:$0xff]
        %v787 = vld [vmem:[%s777 + $0x48] sm:$0xff]
        %v788 = vld [vmem:[%s777 + $0x50] sm:$0xff]
        %v789 = vld [vmem:[%s777 + $0x58] sm:$0xff]
        %v790 = vld [vmem:[%s777 + $0x60] sm:$0xff]
        %v791 = vld [vmem:[%s777 + $0x68] sm:$0xff]
        %v792 = vld [vmem:[%s777 + $0x70] sm:$0xff]
        %v793 = vld [vmem:[%s777 + $0x78] sm:$0xff]
        %v794 = vld [vmem:[%s777 + $0x80] sm:$0xff]
        %v795 = vld [vmem:[%s777 + $0x88] sm:$0xff]
        %v796 = vld [vmem:[%s777 + $0x90] sm:$0xff]
        %v797 = vld [vmem:[%s777 + $0x98] sm:$0xff]
        %v798 = vpack.c.bf16 %v779, %v778
        %v799 = vpack.c.bf16 %v781, %v780
        %v800 = vpack.c.bf16 %v783, %v782
        %v801 = vpack.c.bf16 %v785, %v784
        %v802 = vpack.c.bf16 %v787, %v786
        %v803 = vpack.c.bf16 %v789, %v788
        %v804 = vpack.c.bf16 %v791, %v790
        %v805 = vpack.c.bf16 %v793, %v792
        %v806 = vpack.c.bf16 %v795, %v794
        %v807 = vpack.c.bf16 %v797, %v796
        %s808 = scalar_lea.vmem %s257, 6
        %v809 = vld [vmem:[%s808] sm:$0x3]
        %v811 = vsel %vm302, %v798, 0
        %v814 = vsel %vm302, %v799, 0
        %v817 = vsel %vm302, %v800, 0
        %v820 = vsel %vm302, %v801, 0
        %v823 = vsel %vm302, %v802, 0
        %v826 = vsel %vm302, %v803, 0
        %v829 = vsel %vm302, %v804, 0
        %v832 = vsel %vm302, %v805, 0
        %v835 = vsel %vm302, %v806, 0
        %v838 = vsel %vm302, %v807, 0
        %v841 = vand.u32 %v809, %v336
        %843 = vmatprep.subr.bf16.mxu0 0
        %844 = vmatpush1.bf16.msra.mxu0 0
        %845 = vmatprep.subr.bf16.mxu0 0
        %846 = vmatpush1.bf16.msra.mxu0 0
        %847 = vmatprep.subr.bf16.mxu0 0
        %848 = vmatpush1.bf16.msra.mxu0 0
        %849 = vmatprep.subr.bf16.mxu0 0
        %850 = vmatpush1.bf16.msra.mxu0 0
        %851 = vmatprep.subr.bf16.mxu0 0
        %852 = vmatpush1.bf16.msra.mxu0 0
        %853 = vmatprep.subr.bf16.mxu0 0
        %854 = vmatpush1.bf16.msra.mxu0 0
        %855 = vmatprep.subr.bf16.mxu0 0
        %856 = vmatpush1.bf16.msra.mxu0 0
        %857 = vmatprep.subr.bf16.mxu0 0
        %858 = vmatpush1.bf16.msra.mxu0 %v841
        %859 = vmatprep.subr.bf16.mxu0 0
        %860 = vmatpush2.bf16.msra.mxu0 0
        %861 = vmatprep.subr.bf16.mxu0 0
        %862 = vmatpush2.bf16.msra.mxu0 0
        %863 = vmatprep.subr.bf16.mxu0 0
        %864 = vmatpush2.bf16.msra.mxu0 0
        %865 = vmatprep.subr.bf16.mxu0 0
        %866 = vmatpush2.bf16.msra.mxu0 0
        %867 = vmatprep.subr.bf16.mxu0 0
        %868 = vmatpush2.bf16.msra.mxu0 0
        %869 = vmatprep.subr.bf16.mxu0 0
        %870 = vmatpush2.bf16.msra.mxu0 0
        %871 = vmatprep.subr.bf16.mxu0 0
        %872 = vmatpush2.bf16.msra.mxu0 0
        %873 = vmatprep.subr.bf16.mxu0 0
        %874 = vmatpush2.bf16.msra.mxu0 0
        %875 = vmatprep.mubr.bf16.mxu0 0
        %876 = vmatmul.mubr.bf16.gmra.mxu0 %v811
        %v877 = vpop.f32.mrf.mxu0
        %v878 = vadd.f32 0.0, %v877
        %v879 = vpop.f32.mrf.mxu0
        %v880 = vpop.f32.mrf.mxu0
        %v881 = vadd.f32 0.0, %v880
        %v882 = vpop.f32.mrf.mxu0
        %883 = vmatprep.mubr.bf16.mxu0 0
        %884 = vmatmul.mubr.bf16.gmra.mxu0 %v814
        %v885 = vpop.f32.mrf.mxu0
        %v886 = vadd.f32 0.0, %v885
        %v887 = vpop.f32.mrf.mxu0
        %v888 = vpop.f32.mrf.mxu0
        %v889 = vadd.f32 0.0, %v888
        %v890 = vpop.f32.mrf.mxu0
        %891 = vmatprep.mubr.bf16.mxu0 0
        %892 = vmatmul.mubr.bf16.gmra.mxu0 %v817
        %v893 = vpop.f32.mrf.mxu0
        %v894 = vpop.f32.mrf.mxu0
        %v895 = vpop.f32.mrf.mxu0
        %v896 = vadd.f32 0.0, %v895
        %v897 = vpop.f32.mrf.mxu0
        %898 = vmatprep.mubr.bf16.mxu0 0
        %899 = vmatmul.mubr.bf16.gmra.mxu0 %v820
        %v900 = vpop.f32.mrf.mxu0
        %v901 = vadd.f32 0.0, %v900
        %v902 = vpop.f32.mrf.mxu0
        %v903 = vpop.f32.mrf.mxu0
        %v904 = vadd.f32 0.0, %v903
        %v905 = vpop.f32.mrf.mxu0
        %906 = vmatprep.mubr.bf16.mxu0 0
        %907 = vmatmul.mubr.bf16.gmra.mxu0 %v823
        %v908 = vpop.f32.mrf.mxu0
        %v909 = vadd.f32 0.0, %v908
        %v910 = vpop.f32.mrf.mxu0
        %v911 = vpop.f32.mrf.mxu0
        %v912 = vpop.f32.mrf.mxu0
        %913 = vmatprep.mubr.bf16.mxu0 0
        %914 = vmatmul.mubr.bf16.gmra.mxu0 %v826
        %v915 = vpop.f32.mrf.mxu0
        %v916 = vadd.f32 0.0, %v915
        %v917 = vpop.f32.mrf.mxu0
        %v918 = vpop.f32.mrf.mxu0
        %v919 = vadd.f32 0.0, %v918
        %v920 = vpop.f32.mrf.mxu0
        %921 = vmatprep.mubr.bf16.mxu0 0
        %922 = vmatmul.mubr.bf16.gmra.mxu0 %v829
        %v923 = vpop.f32.mrf.mxu0
        %v924 = vadd.f32 0.0, %v923
        %v925 = vpop.f32.mrf.mxu0
        %v926 = vpop.f32.mrf.mxu0
        %v927 = vadd.f32 0.0, %v926
        %v928 = vpop.f32.mrf.mxu0
        %929 = vmatprep.mubr.bf16.mxu0 0
        %930 = vmatmul.mubr.bf16.gmra.mxu0 %v832
        %v931 = vpop.f32.mrf.mxu0
        %v932 = vpop.f32.mrf.mxu0
        %v933 = vpop.f32.mrf.mxu0
        %v934 = vadd.f32 0.0, %v933
        %v935 = vpop.f32.mrf.mxu0
        %936 = vmatprep.mubr.bf16.mxu0 0
        %937 = vmatmul.mubr.bf16.gmra.mxu0 %v835
        %v938 = vpop.f32.mrf.mxu0
        %v939 = vadd.f32 0.0, %v938
        %v940 = vpop.f32.mrf.mxu0
        %v941 = vpop.f32.mrf.mxu0
        %v942 = vadd.f32 0.0, %v941
        %v943 = vpop.f32.mrf.mxu0
        %944 = vmatprep.mubr.bf16.mxu0 0
        %945 = vmatmul.mubr.bf16.gmra.mxu0 %v838
        %v946 = vpop.f32.mrf.mxu0
        %v947 = vadd.f32 0.0, %v946
        %v948 = vpop.f32.mrf.mxu0
        %v949 = vpop.f32.mrf.mxu0
        %v950 = vpop.f32.mrf.mxu0
        %951 = vdwg.mxu0
        %v952 = vadd.f32 %v759, %v878
        %v953 = vadd.f32 %v760, %v881
        %v954 = vadd.f32 %v761, %v886
        %v955 = vadd.f32 %v762, %v889
        %v956 = vadd.f32 %v763, %v896
        %v957 = vadd.f32 %v764, %v901
        %v958 = vadd.f32 %v765, %v904
        %v959 = vadd.f32 %v766, %v909
        %v960 = vadd.f32 %v767, %v916
        %v961 = vadd.f32 %v768, %v919
        %v962 = vadd.f32 %v769, %v924
        %v963 = vadd.f32 %v770, %v927
        %v964 = vadd.f32 %v771, %v934
        %v965 = vadd.f32 %v772, %v939
        %v966 = vadd.f32 %v773, %v942
        %v967 = vadd.f32 %v774, %v947
        %s968 = scalar_lea.vmem %s257, 8
        %v969 = vld [vmem:[%s968] sm:$0x3]
        %v971 = vand.u32 %v969, %v336
        %973 = vmatprep.subr.bf16.mxu0 0
        %974 = vmatpush1.bf16.msra.mxu0 0
        %975 = vmatprep.subr.bf16.mxu0 0
        %976 = vmatpush1.bf16.msra.mxu0 0
        %977 = vmatprep.subr.bf16.mxu0 0
        %978 = vmatpush1.bf16.msra.mxu0 0
        %979 = vmatprep.subr.bf16.mxu0 0
        %980 = vmatpush1.bf16.msra.mxu0 0
        %981 = vmatprep.subr.bf16.mxu0 0
        %982 = vmatpush1.bf16.msra.mxu0 0
        %983 = vmatprep.subr.bf16.mxu0 0
        %984 = vmatpush1.bf16.msra.mxu0 0
        %985 = vmatprep.subr.bf16.mxu0 0
        %986 = vmatpush1.bf16.msra.mxu0 0
        %987 = vmatprep.subr.bf16.mxu0 0
        %988 = vmatpush1.bf16.msra.mxu0 %v971
        %989 = vmatprep.subr.bf16.mxu0 0
        %990 = vmatpush2.bf16.msra.mxu0 0
        %991 = vmatprep.subr.bf16.mxu0 0
        %992 = vmatpush2.bf16.msra.mxu0 0
        %993 = vmatprep.subr.bf16.mxu0 0
        %994 = vmatpush2.bf16.msra.mxu0 0
        %995 = vmatprep.subr.bf16.mxu0 0
        %996 = vmatpush2.bf16.msra.mxu0 0
        %997 = vmatprep.subr.bf16.mxu0 0
        %998 = vmatpush2.bf16.msra.mxu0 0
        %999 = vmatprep.subr.bf16.mxu0 0
        %1000 = vmatpush2.bf16.msra.mxu0 0
        %1001 = vmatprep.subr.bf16.mxu0 0
        %1002 = vmatpush2.bf16.msra.mxu0 0
        %1003 = vmatprep.subr.bf16.mxu0 0
        %1004 = vmatpush2.bf16.msra.mxu0 0
        %1005 = vmatprep.mubr.bf16.mxu0 0
        %1006 = vmatmul.mubr.bf16.gmra.mxu0 %v811
        %v1007 = vpop.f32.mrf.mxu0
        %v1008 = vadd.f32 0.0, %v1007
        %v1009 = vpop.f32.mrf.mxu0
        %v1010 = vpop.f32.mrf.mxu0
        %v1011 = vadd.f32 0.0, %v1010
        %v1012 = vpop.f32.mrf.mxu0
        %1013 = vmatprep.mubr.bf16.mxu0 0
        %1014 = vmatmul.mubr.bf16.gmra.mxu0 %v814
        %v1015 = vpop.f32.mrf.mxu0
        %v1016 = vadd.f32 0.0, %v1015
        %v1017 = vpop.f32.mrf.mxu0
        %v1018 = vpop.f32.mrf.mxu0
        %v1019 = vadd.f32 0.0, %v1018
        %v1020 = vpop.f32.mrf.mxu0
        %1021 = vmatprep.mubr.bf16.mxu0 0
        %1022 = vmatmul.mubr.bf16.gmra.mxu0 %v817
        %v1023 = vpop.f32.mrf.mxu0
        %v1024 = vadd.f32 0.0, %v1023
        %v1025 = vpop.f32.mrf.mxu0
        %v1026 = vpop.f32.mrf.mxu0
        %v1027 = vadd.f32 0.0, %v1026
        %v1028 = vpop.f32.mrf.mxu0
        %1029 = vmatprep.mubr.bf16.mxu0 0
        %1030 = vmatmul.mubr.bf16.gmra.mxu0 %v820
        %v1031 = vpop.f32.mrf.mxu0
        %v1032 = vadd.f32 0.0, %v1031
        %v1033 = vpop.f32.mrf.mxu0
        %v1034 = vpop.f32.mrf.mxu0
        %v1035 = vadd.f32 0.0, %v1034
        %v1036 = vpop.f32.mrf.mxu0
        %1037 = vmatprep.mubr.bf16.mxu0 0
        %1038 = vmatmul.mubr.bf16.gmra.mxu0 %v823
        %v1039 = vpop.f32.mrf.mxu0
        %v1040 = vadd.f32 0.0, %v1039
        %v1041 = vpop.f32.mrf.mxu0
        %v1042 = vpop.f32.mrf.mxu0
        %v1043 = vadd.f32 0.0, %v1042
        %v1044 = vpop.f32.mrf.mxu0
        %1045 = vmatprep.mubr.bf16.mxu0 0
        %1046 = vmatmul.mubr.bf16.gmra.mxu0 %v826
        %v1047 = vpop.f32.mrf.mxu0
        %v1048 = vadd.f32 0.0, %v1047
        %v1049 = vpop.f32.mrf.mxu0
        %v1050 = vpop.f32.mrf.mxu0
        %v1051 = vadd.f32 0.0, %v1050
        %v1052 = vpop.f32.mrf.mxu0
        %1053 = vmatprep.mubr.bf16.mxu0 0
        %1054 = vmatmul.mubr.bf16.gmra.mxu0 %v829
        %v1055 = vpop.f32.mrf.mxu0
        %v1056 = vadd.f32 0.0, %v1055
        %v1057 = vpop.f32.mrf.mxu0
        %v1058 = vpop.f32.mrf.mxu0
        %v1059 = vadd.f32 0.0, %v1058
        %v1060 = vpop.f32.mrf.mxu0
        %1061 = vmatprep.mubr.bf16.mxu0 0
        %1062 = vmatmul.mubr.bf16.gmra.mxu0 %v832
        %v1063 = vpop.f32.mrf.mxu0
        %v1064 = vadd.f32 0.0, %v1063
        %v1065 = vpop.f32.mrf.mxu0
        %v1066 = vpop.f32.mrf.mxu0
        %v1067 = vadd.f32 0.0, %v1066
        %v1068 = vpop.f32.mrf.mxu0
        %1069 = vmatprep.mubr.bf16.mxu0 0
        %1070 = vmatmul.mubr.bf16.gmra.mxu0 %v835
        %v1071 = vpop.f32.mrf.mxu0
        %v1072 = vadd.f32 0.0, %v1071
        %v1073 = vpop.f32.mrf.mxu0
        %v1074 = vpop.f32.mrf.mxu0
        %v1075 = vadd.f32 0.0, %v1074
        %v1076 = vpop.f32.mrf.mxu0
        %1077 = vmatprep.mubr.bf16.mxu0 0
        %1078 = vmatmul.mubr.bf16.gmra.mxu0 %v838
        %v1079 = vpop.f32.mrf.mxu0
        %v1080 = vadd.f32 0.0, %v1079
        %v1081 = vpop.f32.mrf.mxu0
        %v1082 = vpop.f32.mrf.mxu0
        %v1083 = vadd.f32 0.0, %v1082
        %v1084 = vpop.f32.mrf.mxu0
        %1085 = vdwg.mxu0
        %v1086 = vrot.slane %v1008, 1
        %v1087 = vrot.slane %v1011, 1
        %v1088 = vrot.slane %v1016, 1
        %v1089 = vrot.slane %v1019, 1
        %v1090 = vrot.slane %v1024, 1
        %v1091 = vrot.slane %v1027, 1
        %v1092 = vrot.slane %v1032, 1
        %v1093 = vrot.slane %v1035, 1
        %v1094 = vrot.slane %v1040, 1
        %v1095 = vrot.slane %v1043, 1
        %v1096 = vrot.slane %v1048, 1
        %v1097 = vrot.slane %v1051, 1
        %v1098 = vrot.slane %v1056, 1
        %v1099 = vrot.slane %v1059, 1
        %v1100 = vrot.slane %v1064, 1
        %v1101 = vrot.slane %v1067, 1
        %v1102 = vrot.slane %v1072, 1
        %v1103 = vrot.slane %v1075, 1
        %v1104 = vrot.slane %v1080, 1
        %v1105 = vrot.slane %v1083, 1
        %v1106 = vsel %vm475, %v1104, %v1105
        %v1107 = vsel %vm475, %v1103, %v1104
        %v1108 = vsel %vm475, %v1102, %v1103
        %v1109 = vsel %vm475, %v1101, %v1102
        %v1110 = vsel %vm475, %v1099, %v1100
        %v1111 = vsel %vm475, %v1098, %v1099
        %v1112 = vsel %vm475, %v1097, %v1098
        %v1113 = vsel %vm475, %v1096, %v1097
        %v1114 = vsel %vm475, %v1094, %v1095
        %v1115 = vsel %vm475, %v1093, %v1094
        %v1116 = vsel %vm475, %v1092, %v1093
        %v1117 = vsel %vm475, %v1091, %v1092
        %v1118 = vsel %vm475, %v1089, %v1090
        %v1119 = vsel %vm475, %v1088, %v1089
        %v1120 = vsel %vm475, %v1087, %v1088
        %v1121 = vsel %vm475, %v1086, %v1087
        %v1122 = vadd.f32 %v952, %v1121
        %v1123 = vadd.f32 %v953, %v1120
        %v1124 = vadd.f32 %v954, %v1119
        %v1125 = vadd.f32 %v955, %v1118
        %v1126 = vadd.f32 %v956, %v1117
        %v1127 = vadd.f32 %v957, %v1116
        %v1128 = vadd.f32 %v958, %v1115
        %v1129 = vadd.f32 %v959, %v1114
        %v1130 = vadd.f32 %v960, %v1113
        %v1131 = vadd.f32 %v961, %v1112
        %v1132 = vadd.f32 %v962, %v1111
        %v1133 = vadd.f32 %v963, %v1110
        %v1134 = vadd.f32 %v964, %v1109
        %v1135 = vadd.f32 %v965, %v1108
        %v1136 = vadd.f32 %v966, %v1107
        %v1137 = vadd.f32 %v967, %v1106
        %s1138 = scalar_lea.vmem %s257, 10
        %v1139 = vld [vmem:[%s1138] sm:$0x3]
        %v1141 = vand.u32 %v1139, %v336
        %1143 = vmatprep.subr.bf16.mxu0 0
        %1144 = vmatpush1.bf16.msra.mxu0 0
        %1145 = vmatprep.subr.bf16.mxu0 0
        %1146 = vmatpush1.bf16.msra.mxu0 0
        %1147 = vmatprep.subr.bf16.mxu0 0
        %1148 = vmatpush1.bf16.msra.mxu0 0
        %1149 = vmatprep.subr.bf16.mxu0 0
        %1150 = vmatpush1.bf16.msra.mxu0 0
        %1151 = vmatprep.subr.bf16.mxu0 0
        %1152 = vmatpush1.bf16.msra.mxu0 0
        %1153 = vmatprep.subr.bf16.mxu0 0
        %1154 = vmatpush1.bf16.msra.mxu0 0
        %1155 = vmatprep.subr.bf16.mxu0 0
        %1156 = vmatpush1.bf16.msra.mxu0 0
        %1157 = vmatprep.subr.bf16.mxu0 0
        %1158 = vmatpush1.bf16.msra.mxu0 %v1141
        %1159 = vmatprep.subr.bf16.mxu0 0
        %1160 = vmatpush2.bf16.msra.mxu0 0
        %1161 = vmatprep.subr.bf16.mxu0 0
        %1162 = vmatpush2.bf16.msra.mxu0 0
        %1163 = vmatprep.subr.bf16.mxu0 0
        %1164 = vmatpush2.bf16.msra.mxu0 0
        %1165 = vmatprep.subr.bf16.mxu0 0
        %1166 = vmatpush2.bf16.msra.mxu0 0
        %1167 = vmatprep.subr.bf16.mxu0 0
        %1168 = vmatpush2.bf16.msra.mxu0 0
        %1169 = vmatprep.subr.bf16.mxu0 0
        %1170 = vmatpush2.bf16.msra.mxu0 0
        %1171 = vmatprep.subr.bf16.mxu0 0
        %1172 = vmatpush2.bf16.msra.mxu0 0
        %1173 = vmatprep.subr.bf16.mxu0 0
        %1174 = vmatpush2.bf16.msra.mxu0 0
        %1175 = vmatprep.mubr.bf16.mxu0 0
        %1176 = vmatmul.mubr.bf16.gmra.mxu0 %v811
        %v1177 = vpop.f32.mrf.mxu0
        %v1178 = vadd.f32 0.0, %v1177
        %v1179 = vpop.f32.mrf.mxu0
        %v1180 = vpop.f32.mrf.mxu0
        %v1181 = vadd.f32 0.0, %v1180
        %v1182 = vpop.f32.mrf.mxu0
        %1183 = vmatprep.mubr.bf16.mxu0 0
        %1184 = vmatmul.mubr.bf16.gmra.mxu0 %v814
        %v1185 = vpop.f32.mrf.mxu0
        %v1186 = vadd.f32 0.0, %v1185
        %v1187 = vpop.f32.mrf.mxu0
        %v1188 = vpop.f32.mrf.mxu0
        %v1189 = vadd.f32 0.0, %v1188
        %v1190 = vpop.f32.mrf.mxu0
        %1191 = vmatprep.mubr.bf16.mxu0 0
        %1192 = vmatmul.mubr.bf16.gmra.mxu0 %v817
        %v1193 = vpop.f32.mrf.mxu0
        %v1194 = vadd.f32 0.0, %v1193
        %v1195 = vpop.f32.mrf.mxu0
        %v1196 = vpop.f32.mrf.mxu0
        %v1197 = vadd.f32 0.0, %v1196
        %v1198 = vpop.f32.mrf.mxu0
        %1199 = vmatprep.mubr.bf16.mxu0 0
        %1200 = vmatmul.mubr.bf16.gmra.mxu0 %v820
        %v1201 = vpop.f32.mrf.mxu0
        %v1202 = vadd.f32 0.0, %v1201
        %v1203 = vpop.f32.mrf.mxu0
        %v1204 = vpop.f32.mrf.mxu0
        %v1205 = vadd.f32 0.0, %v1204
        %v1206 = vpop.f32.mrf.mxu0
        %1207 = vmatprep.mubr.bf16.mxu0 0
        %1208 = vmatmul.mubr.bf16.gmra.mxu0 %v823
        %v1209 = vpop.f32.mrf.mxu0
        %v1210 = vadd.f32 0.0, %v1209
        %v1211 = vpop.f32.mrf.mxu0
        %v1212 = vpop.f32.mrf.mxu0
        %v1213 = vadd.f32 0.0, %v1212
        %v1214 = vpop.f32.mrf.mxu0
        %1215 = vmatprep.mubr.bf16.mxu0 0
        %1216 = vmatmul.mubr.bf16.gmra.mxu0 %v826
        %v1217 = vpop.f32.mrf.mxu0
        %v1218 = vadd.f32 0.0, %v1217
        %v1219 = vpop.f32.mrf.mxu0
        %v1220 = vpop.f32.mrf.mxu0
        %v1221 = vadd.f32 0.0, %v1220
        %v1222 = vpop.f32.mrf.mxu0
        %1223 = vmatprep.mubr.bf16.mxu0 0
        %1224 = vmatmul.mubr.bf16.gmra.mxu0 %v829
        %v1225 = vpop.f32.mrf.mxu0
        %v1226 = vadd.f32 0.0, %v1225
        %v1227 = vpop.f32.mrf.mxu0
        %v1228 = vpop.f32.mrf.mxu0
        %v1229 = vadd.f32 0.0, %v1228
        %v1230 = vpop.f32.mrf.mxu0
        %1231 = vmatprep.mubr.bf16.mxu0 0
        %1232 = vmatmul.mubr.bf16.gmra.mxu0 %v832
        %v1233 = vpop.f32.mrf.mxu0
        %v1234 = vadd.f32 0.0, %v1233
        %v1235 = vpop.f32.mrf.mxu0
        %v1236 = vpop.f32.mrf.mxu0
        %v1237 = vadd.f32 0.0, %v1236
        %v1238 = vpop.f32.mrf.mxu0
        %1239 = vmatprep.mubr.bf16.mxu0 0
        %1240 = vmatmul.mubr.bf16.gmra.mxu0 %v835
        %v1241 = vpop.f32.mrf.mxu0
        %v1242 = vadd.f32 0.0, %v1241
        %v1243 = vpop.f32.mrf.mxu0
        %v1244 = vpop.f32.mrf.mxu0
        %v1245 = vadd.f32 0.0, %v1244
        %v1246 = vpop.f32.mrf.mxu0
        %1247 = vmatprep.mubr.bf16.mxu0 0
        %1248 = vmatmul.mubr.bf16.gmra.mxu0 %v838
        %v1249 = vpop.f32.mrf.mxu0
        %v1250 = vadd.f32 0.0, %v1249
        %v1251 = vpop.f32.mrf.mxu0
        %v1252 = vpop.f32.mrf.mxu0
        %v1253 = vadd.f32 0.0, %v1252
        %v1254 = vpop.f32.mrf.mxu0
        %1255 = vdwg.mxu0
        %v1256 = vrot.slane %v1178, 2
        %v1257 = vrot.slane %v1181, 2
        %v1258 = vrot.slane %v1186, 2
        %v1259 = vrot.slane %v1189, 2
        %v1260 = vrot.slane %v1194, 2
        %v1261 = vrot.slane %v1197, 2
        %v1262 = vrot.slane %v1202, 2
        %v1263 = vrot.slane %v1205, 2
        %v1264 = vrot.slane %v1210, 2
        %v1265 = vrot.slane %v1213, 2
        %v1266 = vrot.slane %v1218, 2
        %v1267 = vrot.slane %v1221, 2
        %v1268 = vrot.slane %v1226, 2
        %v1269 = vrot.slane %v1229, 2
        %v1270 = vrot.slane %v1234, 2
        %v1271 = vrot.slane %v1237, 2
        %v1272 = vrot.slane %v1242, 2
        %v1273 = vrot.slane %v1245, 2
        %v1274 = vrot.slane %v1250, 2
        %v1275 = vrot.slane %v1253, 2
        %v1276 = vsel %vm742, %v1274, %v1275
        %v1277 = vsel %vm742, %v1273, %v1274
        %v1278 = vsel %vm742, %v1272, %v1273
        %v1279 = vsel %vm742, %v1271, %v1272
        %v1280 = vsel %vm742, %v1269, %v1270
        %v1281 = vsel %vm742, %v1268, %v1269
        %v1282 = vsel %vm742, %v1267, %v1268
        %v1283 = vsel %vm742, %v1266, %v1267
        %v1284 = vsel %vm742, %v1264, %v1265
        %v1285 = vsel %vm742, %v1263, %v1264
        %v1286 = vsel %vm742, %v1262, %v1263
        %v1287 = vsel %vm742, %v1261, %v1262
        %v1288 = vsel %vm742, %v1259, %v1260
        %v1289 = vsel %vm742, %v1258, %v1259
        %v1290 = vsel %vm742, %v1257, %v1258
        %v1291 = vsel %vm742, %v1256, %v1257
        %v1292 = vadd.f32 %v1122, %v1291
        %v1293 = vadd.f32 %v1123, %v1290
        %v1294 = vadd.f32 %v1124, %v1289
        %v1295 = vadd.f32 %v1125, %v1288
        %v1296 = vadd.f32 %v1126, %v1287
        %v1297 = vadd.f32 %v1127, %v1286
        %v1298 = vadd.f32 %v1128, %v1285
        %v1299 = vadd.f32 %v1129, %v1284
        %v1300 = vadd.f32 %v1130, %v1283
        %v1301 = vadd.f32 %v1131, %v1282
        %v1302 = vadd.f32 %v1132, %v1281
        %v1303 = vadd.f32 %v1133, %v1280
        %v1304 = vadd.f32 %v1134, %v1279
        %v1305 = vadd.f32 %v1135, %v1278
        %v1306 = vadd.f32 %v1136, %v1277
        %v1307 = vadd.f32 %v1137, %v1276
        %s1308 = sadd.s32 %s266, 2
        %s1309 = smul.u32 %s1308, 40
        %s1310 = scalar_lea.vmem %s253, %s1309
        %v1311 = vld [vmem:[%s1310] sm:$0xff]
        %v1312 = vld [vmem:[%s1310 + $0x8] sm:$0xff]
        %v1313 = vld [vmem:[%s1310 + $0x10] sm:$0xff]
        %v1314 = vld [vmem:[%s1310 + $0x18] sm:$0xff]
        %v1315 = vld [vmem:[%s1310 + $0x20] sm:$0xff]
        %v1316 = vld [vmem:[%s1310 + $0x28] sm:$0xff]
        %v1317 = vld [vmem:[%s1310 + $0x30] sm:$0xff]
        %v1318 = vld [vmem:[%s1310 + $0x38] sm:$0xff]
        %v1319 = vld [vmem:[%s1310 + $0x40] sm:$0xff]
        %v1320 = vld [vmem:[%s1310 + $0x48] sm:$0xff]
        %v1321 = vld [vmem:[%s1310 + $0x50] sm:$0xff]
        %v1322 = vld [vmem:[%s1310 + $0x58] sm:$0xff]
        %v1323 = vld [vmem:[%s1310 + $0x60] sm:$0xff]
        %v1324 = vld [vmem:[%s1310 + $0x68] sm:$0xff]
        %v1325 = vld [vmem:[%s1310 + $0x70] sm:$0xff]
        %v1326 = vld [vmem:[%s1310 + $0x78] sm:$0xff]
        %v1327 = vld [vmem:[%s1310 + $0x80] sm:$0xff]
        %v1328 = vld [vmem:[%s1310 + $0x88] sm:$0xff]
        %v1329 = vld [vmem:[%s1310 + $0x90] sm:$0xff]
        %v1330 = vld [vmem:[%s1310 + $0x98] sm:$0xff]
        %v1331 = vpack.c.bf16 %v1312, %v1311
        %v1332 = vpack.c.bf16 %v1314, %v1313
        %v1333 = vpack.c.bf16 %v1316, %v1315
        %v1334 = vpack.c.bf16 %v1318, %v1317
        %v1335 = vpack.c.bf16 %v1320, %v1319
        %v1336 = vpack.c.bf16 %v1322, %v1321
        %v1337 = vpack.c.bf16 %v1324, %v1323
        %v1338 = vpack.c.bf16 %v1326, %v1325
        %v1339 = vpack.c.bf16 %v1328, %v1327
        %v1340 = vpack.c.bf16 %v1330, %v1329
        %s1341 = scalar_lea.vmem %s257, 12
        %v1342 = vld [vmem:[%s1341] sm:$0x3]
        %v1344 = vsel %vm302, %v1331, 0
        %v1347 = vsel %vm302, %v1332, 0
        %v1350 = vsel %vm302, %v1333, 0
        %v1353 = vsel %vm302, %v1334, 0
        %v1356 = vsel %vm302, %v1335, 0
        %v1359 = vsel %vm302, %v1336, 0
        %v1362 = vsel %vm302, %v1337, 0
        %v1365 = vsel %vm302, %v1338, 0
        %v1368 = vsel %vm302, %v1339, 0
        %v1371 = vsel %vm302, %v1340, 0
        %v1374 = vand.u32 %v1342, %v336
        %1376 = vmatprep.subr.bf16.mxu0 0
        %1377 = vmatpush1.bf16.msra.mxu0 0
        %1378 = vmatprep.subr.bf16.mxu0 0
        %1379 = vmatpush1.bf16.msra.mxu0 0
        %1380 = vmatprep.subr.bf16.mxu0 0
        %1381 = vmatpush1.bf16.msra.mxu0 0
        %1382 = vmatprep.subr.bf16.mxu0 0
        %1383 = vmatpush1.bf16.msra.mxu0 0
        %1384 = vmatprep.subr.bf16.mxu0 0
        %1385 = vmatpush1.bf16.msra.mxu0 0
        %1386 = vmatprep.subr.bf16.mxu0 0
        %1387 = vmatpush1.bf16.msra.mxu0 0
        %1388 = vmatprep.subr.bf16.mxu0 0
        %1389 = vmatpush1.bf16.msra.mxu0 0
        %1390 = vmatprep.subr.bf16.mxu0 0
        %1391 = vmatpush1.bf16.msra.mxu0 %v1374
        %1392 = vmatprep.subr.bf16.mxu0 0
        %1393 = vmatpush2.bf16.msra.mxu0 0
        %1394 = vmatprep.subr.bf16.mxu0 0
        %1395 = vmatpush2.bf16.msra.mxu0 0
        %1396 = vmatprep.subr.bf16.mxu0 0
        %1397 = vmatpush2.bf16.msra.mxu0 0
        %1398 = vmatprep.subr.bf16.mxu0 0
        %1399 = vmatpush2.bf16.msra.mxu0 0
        %1400 = vmatprep.subr.bf16.mxu0 0
        %1401 = vmatpush2.bf16.msra.mxu0 0
        %1402 = vmatprep.subr.bf16.mxu0 0
        %1403 = vmatpush2.bf16.msra.mxu0 0
        %1404 = vmatprep.subr.bf16.mxu0 0
        %1405 = vmatpush2.bf16.msra.mxu0 0
        %1406 = vmatprep.subr.bf16.mxu0 0
        %1407 = vmatpush2.bf16.msra.mxu0 0
        %1408 = vmatprep.mubr.bf16.mxu0 0
        %1409 = vmatmul.mubr.bf16.gmra.mxu0 %v1344
        %v1410 = vpop.f32.mrf.mxu0
        %v1411 = vadd.f32 0.0, %v1410
        %v1412 = vpop.f32.mrf.mxu0
        %v1413 = vpop.f32.mrf.mxu0
        %v1414 = vadd.f32 0.0, %v1413
        %v1415 = vpop.f32.mrf.mxu0
        %1416 = vmatprep.mubr.bf16.mxu0 0
        %1417 = vmatmul.mubr.bf16.gmra.mxu0 %v1347
        %v1418 = vpop.f32.mrf.mxu0
        %v1419 = vadd.f32 0.0, %v1418
        %v1420 = vpop.f32.mrf.mxu0
        %v1421 = vpop.f32.mrf.mxu0
        %v1422 = vadd.f32 0.0, %v1421
        %v1423 = vpop.f32.mrf.mxu0
        %1424 = vmatprep.mubr.bf16.mxu0 0
        %1425 = vmatmul.mubr.bf16.gmra.mxu0 %v1350
        %v1426 = vpop.f32.mrf.mxu0
        %v1427 = vpop.f32.mrf.mxu0
        %v1428 = vpop.f32.mrf.mxu0
        %v1429 = vadd.f32 0.0, %v1428
        %v1430 = vpop.f32.mrf.mxu0
        %1431 = vmatprep.mubr.bf16.mxu0 0
        %1432 = vmatmul.mubr.bf16.gmra.mxu0 %v1353
        %v1433 = vpop.f32.mrf.mxu0
        %v1434 = vadd.f32 0.0, %v1433
        %v1435 = vpop.f32.mrf.mxu0
        %v1436 = vpop.f32.mrf.mxu0
        %v1437 = vadd.f32 0.0, %v1436
        %v1438 = vpop.f32.mrf.mxu0
        %1439 = vmatprep.mubr.bf16.mxu0 0
        %1440 = vmatmul.mubr.bf16.gmra.mxu0 %v1356
        %v1441 = vpop.f32.mrf.mxu0
        %v1442 = vadd.f32 0.0, %v1441
        %v1443 = vpop.f32.mrf.mxu0
        %v1444 = vpop.f32.mrf.mxu0
        %v1445 = vpop.f32.mrf.mxu0
        %1446 = vmatprep.mubr.bf16.mxu0 0
        %1447 = vmatmul.mubr.bf16.gmra.mxu0 %v1359
        %v1448 = vpop.f32.mrf.mxu0
        %v1449 = vadd.f32 0.0, %v1448
        %v1450 = vpop.f32.mrf.mxu0
        %v1451 = vpop.f32.mrf.mxu0
        %v1452 = vadd.f32 0.0, %v1451
        %v1453 = vpop.f32.mrf.mxu0
        %1454 = vmatprep.mubr.bf16.mxu0 0
        %1455 = vmatmul.mubr.bf16.gmra.mxu0 %v1362
        %v1456 = vpop.f32.mrf.mxu0
        %v1457 = vadd.f32 0.0, %v1456
        %v1458 = vpop.f32.mrf.mxu0
        %v1459 = vpop.f32.mrf.mxu0
        %v1460 = vadd.f32 0.0, %v1459
        %v1461 = vpop.f32.mrf.mxu0
        %1462 = vmatprep.mubr.bf16.mxu0 0
        %1463 = vmatmul.mubr.bf16.gmra.mxu0 %v1365
        %v1464 = vpop.f32.mrf.mxu0
        %v1465 = vpop.f32.mrf.mxu0
        %v1466 = vpop.f32.mrf.mxu0
        %v1467 = vadd.f32 0.0, %v1466
        %v1468 = vpop.f32.mrf.mxu0
        %1469 = vmatprep.mubr.bf16.mxu0 0
        %1470 = vmatmul.mubr.bf16.gmra.mxu0 %v1368
        %v1471 = vpop.f32.mrf.mxu0
        %v1472 = vadd.f32 0.0, %v1471
        %v1473 = vpop.f32.mrf.mxu0
        %v1474 = vpop.f32.mrf.mxu0
        %v1475 = vadd.f32 0.0, %v1474
        %v1476 = vpop.f32.mrf.mxu0
        %1477 = vmatprep.mubr.bf16.mxu0 0
        %1478 = vmatmul.mubr.bf16.gmra.mxu0 %v1371
        %v1479 = vpop.f32.mrf.mxu0
        %v1480 = vadd.f32 0.0, %v1479
        %v1481 = vpop.f32.mrf.mxu0
        %v1482 = vpop.f32.mrf.mxu0
        %v1483 = vpop.f32.mrf.mxu0
        %1484 = vdwg.mxu0
        %v1485 = vadd.f32 %v1292, %v1411
        %v1486 = vadd.f32 %v1293, %v1414
        %v1487 = vadd.f32 %v1294, %v1419
        %v1488 = vadd.f32 %v1295, %v1422
        %v1489 = vadd.f32 %v1296, %v1429
        %v1490 = vadd.f32 %v1297, %v1434
        %v1491 = vadd.f32 %v1298, %v1437
        %v1492 = vadd.f32 %v1299, %v1442
        %v1493 = vadd.f32 %v1300, %v1449
        %v1494 = vadd.f32 %v1301, %v1452
        %v1495 = vadd.f32 %v1302, %v1457
        %v1496 = vadd.f32 %v1303, %v1460
        %v1497 = vadd.f32 %v1304, %v1467
        %v1498 = vadd.f32 %v1305, %v1472
        %v1499 = vadd.f32 %v1306, %v1475
        %v1500 = vadd.f32 %v1307, %v1480
        %s1501 = scalar_lea.vmem %s257, 14
        %v1502 = vld [vmem:[%s1501] sm:$0x3]
        %v1504 = vand.u32 %v1502, %v336
        %1506 = vmatprep.subr.bf16.mxu0 0
        %1507 = vmatpush1.bf16.msra.mxu0 0
        %1508 = vmatprep.subr.bf16.mxu0 0
        %1509 = vmatpush1.bf16.msra.mxu0 0
        %1510 = vmatprep.subr.bf16.mxu0 0
        %1511 = vmatpush1.bf16.msra.mxu0 0
        %1512 = vmatprep.subr.bf16.mxu0 0
        %1513 = vmatpush1.bf16.msra.mxu0 0
        %1514 = vmatprep.subr.bf16.mxu0 0
        %1515 = vmatpush1.bf16.msra.mxu0 0
        %1516 = vmatprep.subr.bf16.mxu0 0
        %1517 = vmatpush1.bf16.msra.mxu0 0
        %1518 = vmatprep.subr.bf16.mxu0 0
        %1519 = vmatpush1.bf16.msra.mxu0 0
        %1520 = vmatprep.subr.bf16.mxu0 0
        %1521 = vmatpush1.bf16.msra.mxu0 %v1504
        %1522 = vmatprep.subr.bf16.mxu0 0
        %1523 = vmatpush2.bf16.msra.mxu0 0
        %1524 = vmatprep.subr.bf16.mxu0 0
        %1525 = vmatpush2.bf16.msra.mxu0 0
        %1526 = vmatprep.subr.bf16.mxu0 0
        %1527 = vmatpush2.bf16.msra.mxu0 0
        %1528 = vmatprep.subr.bf16.mxu0 0
        %1529 = vmatpush2.bf16.msra.mxu0 0
        %1530 = vmatprep.subr.bf16.mxu0 0
        %1531 = vmatpush2.bf16.msra.mxu0 0
        %1532 = vmatprep.subr.bf16.mxu0 0
        %1533 = vmatpush2.bf16.msra.mxu0 0
        %1534 = vmatprep.subr.bf16.mxu0 0
        %1535 = vmatpush2.bf16.msra.mxu0 0
        %1536 = vmatprep.subr.bf16.mxu0 0
        %1537 = vmatpush2.bf16.msra.mxu0 0
        %1538 = vmatprep.mubr.bf16.mxu0 0
        %1539 = vmatmul.mubr.bf16.gmra.mxu0 %v1344
        %v1540 = vpop.f32.mrf.mxu0
        %v1541 = vadd.f32 0.0, %v1540
        %v1542 = vpop.f32.mrf.mxu0
        %v1543 = vpop.f32.mrf.mxu0
        %v1544 = vadd.f32 0.0, %v1543
        %v1545 = vpop.f32.mrf.mxu0
        %1546 = vmatprep.mubr.bf16.mxu0 0
        %1547 = vmatmul.mubr.bf16.gmra.mxu0 %v1347
        %v1548 = vpop.f32.mrf.mxu0
        %v1549 = vadd.f32 0.0, %v1548
        %v1550 = vpop.f32.mrf.mxu0
        %v1551 = vpop.f32.mrf.mxu0
        %v1552 = vadd.f32 0.0, %v1551
        %v1553 = vpop.f32.mrf.mxu0
        %1554 = vmatprep.mubr.bf16.mxu0 0
        %1555 = vmatmul.mubr.bf16.gmra.mxu0 %v1350
        %v1556 = vpop.f32.mrf.mxu0
        %v1557 = vadd.f32 0.0, %v1556
        %v1558 = vpop.f32.mrf.mxu0
        %v1559 = vpop.f32.mrf.mxu0
        %v1560 = vadd.f32 0.0, %v1559
        %v1561 = vpop.f32.mrf.mxu0
        %1562 = vmatprep.mubr.bf16.mxu0 0
        %1563 = vmatmul.mubr.bf16.gmra.mxu0 %v1353
        %v1564 = vpop.f32.mrf.mxu0
        %v1565 = vadd.f32 0.0, %v1564
        %v1566 = vpop.f32.mrf.mxu0
        %v1567 = vpop.f32.mrf.mxu0
        %v1568 = vadd.f32 0.0, %v1567
        %v1569 = vpop.f32.mrf.mxu0
        %1570 = vmatprep.mubr.bf16.mxu0 0
        %1571 = vmatmul.mubr.bf16.gmra.mxu0 %v1356
        %v1572 = vpop.f32.mrf.mxu0
        %v1573 = vadd.f32 0.0, %v1572
        %v1574 = vpop.f32.mrf.mxu0
        %v1575 = vpop.f32.mrf.mxu0
        %v1576 = vadd.f32 0.0, %v1575
        %v1577 = vpop.f32.mrf.mxu0
        %1578 = vmatprep.mubr.bf16.mxu0 0
        %1579 = vmatmul.mubr.bf16.gmra.mxu0 %v1359
        %v1580 = vpop.f32.mrf.mxu0
        %v1581 = vadd.f32 0.0, %v1580
        %v1582 = vpop.f32.mrf.mxu0
        %v1583 = vpop.f32.mrf.mxu0
        %v1584 = vadd.f32 0.0, %v1583
        %v1585 = vpop.f32.mrf.mxu0
        %1586 = vmatprep.mubr.bf16.mxu0 0
        %1587 = vmatmul.mubr.bf16.gmra.mxu0 %v1362
        %v1588 = vpop.f32.mrf.mxu0
        %v1589 = vadd.f32 0.0, %v1588
        %v1590 = vpop.f32.mrf.mxu0
        %v1591 = vpop.f32.mrf.mxu0
        %v1592 = vadd.f32 0.0, %v1591
        %v1593 = vpop.f32.mrf.mxu0
        %1594 = vmatprep.mubr.bf16.mxu0 0
        %1595 = vmatmul.mubr.bf16.gmra.mxu0 %v1365
        %v1596 = vpop.f32.mrf.mxu0
        %v1597 = vadd.f32 0.0, %v1596
        %v1598 = vpop.f32.mrf.mxu0
        %v1599 = vpop.f32.mrf.mxu0
        %v1600 = vadd.f32 0.0, %v1599
        %v1601 = vpop.f32.mrf.mxu0
        %1602 = vmatprep.mubr.bf16.mxu0 0
        %1603 = vmatmul.mubr.bf16.gmra.mxu0 %v1368
        %v1604 = vpop.f32.mrf.mxu0
        %v1605 = vadd.f32 0.0, %v1604
        %v1606 = vpop.f32.mrf.mxu0
        %v1607 = vpop.f32.mrf.mxu0
        %v1608 = vadd.f32 0.0, %v1607
        %v1609 = vpop.f32.mrf.mxu0
        %1610 = vmatprep.mubr.bf16.mxu0 0
        %1611 = vmatmul.mubr.bf16.gmra.mxu0 %v1371
        %v1612 = vpop.f32.mrf.mxu0
        %v1613 = vadd.f32 0.0, %v1612
        %v1614 = vpop.f32.mrf.mxu0
        %v1615 = vpop.f32.mrf.mxu0
        %v1616 = vadd.f32 0.0, %v1615
        %v1617 = vpop.f32.mrf.mxu0
        %1618 = vdwg.mxu0
        %v1619 = vrot.slane %v1541, 1
        %v1620 = vrot.slane %v1544, 1
        %v1621 = vrot.slane %v1549, 1
        %v1622 = vrot.slane %v1552, 1
        %v1623 = vrot.slane %v1557, 1
        %v1624 = vrot.slane %v1560, 1
        %v1625 = vrot.slane %v1565, 1
        %v1626 = vrot.slane %v1568, 1
        %v1627 = vrot.slane %v1573, 1
        %v1628 = vrot.slane %v1576, 1
        %v1629 = vrot.slane %v1581, 1
        %v1630 = vrot.slane %v1584, 1
        %v1631 = vrot.slane %v1589, 1
        %v1632 = vrot.slane %v1592, 1
        %v1633 = vrot.slane %v1597, 1
        %v1634 = vrot.slane %v1600, 1
        %v1635 = vrot.slane %v1605, 1
        %v1636 = vrot.slane %v1608, 1
        %v1637 = vrot.slane %v1613, 1
        %v1638 = vrot.slane %v1616, 1
        %v1639 = vsel %vm475, %v1637, %v1638
        %v1640 = vsel %vm475, %v1636, %v1637
        %v1641 = vsel %vm475, %v1635, %v1636
        %v1642 = vsel %vm475, %v1634, %v1635
        %v1643 = vsel %vm475, %v1632, %v1633
        %v1644 = vsel %vm475, %v1631, %v1632
        %v1645 = vsel %vm475, %v1630, %v1631
        %v1646 = vsel %vm475, %v1629, %v1630
        %v1647 = vsel %vm475, %v1627, %v1628
        %v1648 = vsel %vm475, %v1626, %v1627
        %v1649 = vsel %vm475, %v1625, %v1626
        %v1650 = vsel %vm475, %v1624, %v1625
        %v1651 = vsel %vm475, %v1622, %v1623
        %v1652 = vsel %vm475, %v1621, %v1622
        %v1653 = vsel %vm475, %v1620, %v1621
        %v1654 = vsel %vm475, %v1619, %v1620
        %v1655 = vadd.f32 %v1485, %v1654
        %v1656 = vadd.f32 %v1486, %v1653
        %v1657 = vadd.f32 %v1487, %v1652
        %v1658 = vadd.f32 %v1488, %v1651
        %v1659 = vadd.f32 %v1489, %v1650
        %v1660 = vadd.f32 %v1490, %v1649
        %v1661 = vadd.f32 %v1491, %v1648
        %v1662 = vadd.f32 %v1492, %v1647
        %v1663 = vadd.f32 %v1493, %v1646
        %v1664 = vadd.f32 %v1494, %v1645
        %v1665 = vadd.f32 %v1495, %v1644
        %v1666 = vadd.f32 %v1496, %v1643
        %v1667 = vadd.f32 %v1497, %v1642
        %v1668 = vadd.f32 %v1498, %v1641
        %v1669 = vadd.f32 %v1499, %v1640
        %v1670 = vadd.f32 %v1500, %v1639
        %s1671 = scalar_lea.vmem %s257, 16
        %v1672 = vld [vmem:[%s1671] sm:$0x3]
        %v1674 = vand.u32 %v1672, %v336
        %1676 = vmatprep.subr.bf16.mxu0 0
        %1677 = vmatpush1.bf16.msra.mxu0 0
        %1678 = vmatprep.subr.bf16.mxu0 0
        %1679 = vmatpush1.bf16.msra.mxu0 0
        %1680 = vmatprep.subr.bf16.mxu0 0
        %1681 = vmatpush1.bf16.msra.mxu0 0
        %1682 = vmatprep.subr.bf16.mxu0 0
        %1683 = vmatpush1.bf16.msra.mxu0 0
        %1684 = vmatprep.subr.bf16.mxu0 0
        %1685 = vmatpush1.bf16.msra.mxu0 0
        %1686 = vmatprep.subr.bf16.mxu0 0
        %1687 = vmatpush1.bf16.msra.mxu0 0
        %1688 = vmatprep.subr.bf16.mxu0 0
        %1689 = vmatpush1.bf16.msra.mxu0 0
        %1690 = vmatprep.subr.bf16.mxu0 0
        %1691 = vmatpush1.bf16.msra.mxu0 %v1674
        %1692 = vmatprep.subr.bf16.mxu0 0
        %1693 = vmatpush2.bf16.msra.mxu0 0
        %1694 = vmatprep.subr.bf16.mxu0 0
        %1695 = vmatpush2.bf16.msra.mxu0 0
        %1696 = vmatprep.subr.bf16.mxu0 0
        %1697 = vmatpush2.bf16.msra.mxu0 0
        %1698 = vmatprep.subr.bf16.mxu0 0
        %1699 = vmatpush2.bf16.msra.mxu0 0
        %1700 = vmatprep.subr.bf16.mxu0 0
        %1701 = vmatpush2.bf16.msra.mxu0 0
        %1702 = vmatprep.subr.bf16.mxu0 0
        %1703 = vmatpush2.bf16.msra.mxu0 0
        %1704 = vmatprep.subr.bf16.mxu0 0
        %1705 = vmatpush2.bf16.msra.mxu0 0
        %1706 = vmatprep.subr.bf16.mxu0 0
        %1707 = vmatpush2.bf16.msra.mxu0 0
        %1708 = vmatprep.mubr.bf16.mxu0 0
        %1709 = vmatmul.mubr.bf16.gmra.mxu0 %v1344
        %v1710 = vpop.f32.mrf.mxu0
        %v1711 = vadd.f32 0.0, %v1710
        %v1712 = vpop.f32.mrf.mxu0
        %v1713 = vpop.f32.mrf.mxu0
        %v1714 = vadd.f32 0.0, %v1713
        %v1715 = vpop.f32.mrf.mxu0
        %1716 = vmatprep.mubr.bf16.mxu0 0
        %1717 = vmatmul.mubr.bf16.gmra.mxu0 %v1347
        %v1718 = vpop.f32.mrf.mxu0
        %v1719 = vadd.f32 0.0, %v1718
        %v1720 = vpop.f32.mrf.mxu0
        %v1721 = vpop.f32.mrf.mxu0
        %v1722 = vadd.f32 0.0, %v1721
        %v1723 = vpop.f32.mrf.mxu0
        %1724 = vmatprep.mubr.bf16.mxu0 0
        %1725 = vmatmul.mubr.bf16.gmra.mxu0 %v1350
        %v1726 = vpop.f32.mrf.mxu0
        %v1727 = vadd.f32 0.0, %v1726
        %v1728 = vpop.f32.mrf.mxu0
        %v1729 = vpop.f32.mrf.mxu0
        %v1730 = vadd.f32 0.0, %v1729
        %v1731 = vpop.f32.mrf.mxu0
        %1732 = vmatprep.mubr.bf16.mxu0 0
        %1733 = vmatmul.mubr.bf16.gmra.mxu0 %v1353
        %v1734 = vpop.f32.mrf.mxu0
        %v1735 = vadd.f32 0.0, %v1734
        %v1736 = vpop.f32.mrf.mxu0
        %v1737 = vpop.f32.mrf.mxu0
        %v1738 = vadd.f32 0.0, %v1737
        %v1739 = vpop.f32.mrf.mxu0
        %1740 = vmatprep.mubr.bf16.mxu0 0
        %1741 = vmatmul.mubr.bf16.gmra.mxu0 %v1356
        %v1742 = vpop.f32.mrf.mxu0
        %v1743 = vadd.f32 0.0, %v1742
        %v1744 = vpop.f32.mrf.mxu0
        %v1745 = vpop.f32.mrf.mxu0
        %v1746 = vadd.f32 0.0, %v1745
        %v1747 = vpop.f32.mrf.mxu0
        %1748 = vmatprep.mubr.bf16.mxu0 0
        %1749 = vmatmul.mubr.bf16.gmra.mxu0 %v1359
        %v1750 = vpop.f32.mrf.mxu0
        %v1751 = vadd.f32 0.0, %v1750
        %v1752 = vpop.f32.mrf.mxu0
        %v1753 = vpop.f32.mrf.mxu0
        %v1754 = vadd.f32 0.0, %v1753
        %v1755 = vpop.f32.mrf.mxu0
        %1756 = vmatprep.mubr.bf16.mxu0 0
        %1757 = vmatmul.mubr.bf16.gmra.mxu0 %v1362
        %v1758 = vpop.f32.mrf.mxu0
        %v1759 = vadd.f32 0.0, %v1758
        %v1760 = vpop.f32.mrf.mxu0
        %v1761 = vpop.f32.mrf.mxu0
        %v1762 = vadd.f32 0.0, %v1761
        %v1763 = vpop.f32.mrf.mxu0
        %1764 = vmatprep.mubr.bf16.mxu0 0
        %1765 = vmatmul.mubr.bf16.gmra.mxu0 %v1365
        %v1766 = vpop.f32.mrf.mxu0
        %v1767 = vadd.f32 0.0, %v1766
        %v1768 = vpop.f32.mrf.mxu0
        %v1769 = vpop.f32.mrf.mxu0
        %v1770 = vadd.f32 0.0, %v1769
        %v1771 = vpop.f32.mrf.mxu0
        %1772 = vmatprep.mubr.bf16.mxu0 0
        %1773 = vmatmul.mubr.bf16.gmra.mxu0 %v1368
        %v1774 = vpop.f32.mrf.mxu0
        %v1775 = vadd.f32 0.0, %v1774
        %v1776 = vpop.f32.mrf.mxu0
        %v1777 = vpop.f32.mrf.mxu0
        %v1778 = vadd.f32 0.0, %v1777
        %v1779 = vpop.f32.mrf.mxu0
        %1780 = vmatprep.mubr.bf16.mxu0 0
        %1781 = vmatmul.mubr.bf16.gmra.mxu0 %v1371
        %v1782 = vpop.f32.mrf.mxu0
        %v1783 = vadd.f32 0.0, %v1782
        %v1784 = vpop.f32.mrf.mxu0
        %v1785 = vpop.f32.mrf.mxu0
        %v1786 = vadd.f32 0.0, %v1785
        %v1787 = vpop.f32.mrf.mxu0
        %1788 = vdwg.mxu0
        %v1789 = vrot.slane %v1711, 2
        %v1790 = vrot.slane %v1714, 2
        %v1791 = vrot.slane %v1719, 2
        %v1792 = vrot.slane %v1722, 2
        %v1793 = vrot.slane %v1727, 2
        %v1794 = vrot.slane %v1730, 2
        %v1795 = vrot.slane %v1735, 2
        %v1796 = vrot.slane %v1738, 2
        %v1797 = vrot.slane %v1743, 2
        %v1798 = vrot.slane %v1746, 2
        %v1799 = vrot.slane %v1751, 2
        %v1800 = vrot.slane %v1754, 2
        %v1801 = vrot.slane %v1759, 2
        %v1802 = vrot.slane %v1762, 2
        %v1803 = vrot.slane %v1767, 2
        %v1804 = vrot.slane %v1770, 2
        %v1805 = vrot.slane %v1775, 2
        %v1806 = vrot.slane %v1778, 2
        %v1807 = vrot.slane %v1783, 2
        %v1808 = vrot.slane %v1786, 2
        %v1809 = vsel %vm742, %v1807, %v1808
        %v1810 = vsel %vm742, %v1806, %v1807
        %v1811 = vsel %vm742, %v1805, %v1806
        %v1812 = vsel %vm742, %v1804, %v1805
        %v1813 = vsel %vm742, %v1802, %v1803
        %v1814 = vsel %vm742, %v1801, %v1802
        %v1815 = vsel %vm742, %v1800, %v1801
        %v1816 = vsel %vm742, %v1799, %v1800
        %v1817 = vsel %vm742, %v1797, %v1798
        %v1818 = vsel %vm742, %v1796, %v1797
        %v1819 = vsel %vm742, %v1795, %v1796
        %v1820 = vsel %vm742, %v1794, %v1795
        %v1821 = vsel %vm742, %v1792, %v1793
        %v1822 = vsel %vm742, %v1791, %v1792
        %v1823 = vsel %vm742, %v1790, %v1791
        %v1824 = vsel %vm742, %v1789, %v1790
        %v1825 = vadd.f32 %v1655, %v1824
        %v1826 = vadd.f32 %v1656, %v1823
        %v1827 = vadd.f32 %v1657, %v1822
        %v1828 = vadd.f32 %v1658, %v1821
        %v1829 = vadd.f32 %v1659, %v1820
        %v1830 = vadd.f32 %v1660, %v1819
        %v1831 = vadd.f32 %v1661, %v1818
        %v1832 = vadd.f32 %v1662, %v1817
        %v1833 = vadd.f32 %v1663, %v1816
        %v1834 = vadd.f32 %v1664, %v1815
        %v1835 = vadd.f32 %v1665, %v1814
        %v1836 = vadd.f32 %v1666, %v1813
        %v1837 = vadd.f32 %v1667, %v1812
        %v1838 = vadd.f32 %v1668, %v1811
        %v1839 = vadd.f32 %v1669, %v1810
        %v1840 = vadd.f32 %v1670, %v1809
        %v1841 = vld [vmem:[%s260] sm:$0x1]
        %v1843 = vlaneseq
        %v1844 = vshrl.u32 %v1843, 7
        %v1845 = vsub.s32 0, %v1844
        %v1846 = vrot.slane %v1841, %v1845
        %v1848 = vmul.f32 %v1825, %v1846
        %v1849 = vmul.f32 %v1826, %v1846
        %v1850 = vmul.f32 %v1827, %v1846
        %v1851 = vmul.f32 %v1828, %v1846
        %v1852 = vmul.f32 %v1829, %v1846
        %v1853 = vmul.f32 %v1830, %v1846
        %v1854 = vmul.f32 %v1831, %v1846
        %v1855 = vmul.f32 %v1832, %v1846
        %v1856 = vmul.f32 %v1833, %v1846
        %v1857 = vmul.f32 %v1834, %v1846
        %v1858 = vmul.f32 %v1835, %v1846
        %v1859 = vmul.f32 %v1836, %v1846
        %v1860 = vmul.f32 %v1837, %v1846
        %v1861 = vmul.f32 %v1838, %v1846
        %v1862 = vmul.f32 %v1839, %v1846
        %v1863 = vmul.f32 %v1840, %v1846
        %v1864 = vld [vmem:[%s263] sm:$0x1]
        %v1866 = vlaneseq
        %v1867 = vshrl.u32 %v1866, 7
        %v1868 = vsub.s32 0, %v1867
        %v1869 = vrot.slane %v1864, %v1868
        %v1871 = vadd.f32 %v1848, %v1869
        %v1872 = vadd.f32 %v1849, %v1869
        %v1873 = vadd.f32 %v1850, %v1869
        %v1874 = vadd.f32 %v1851, %v1869
        %v1875 = vadd.f32 %v1852, %v1869
        %v1876 = vadd.f32 %v1853, %v1869
        %v1877 = vadd.f32 %v1854, %v1869
        %v1878 = vadd.f32 %v1855, %v1869
        %v1879 = vadd.f32 %v1856, %v1869
        %v1880 = vadd.f32 %v1857, %v1869
        %v1881 = vadd.f32 %v1858, %v1869
        %v1882 = vadd.f32 %v1859, %v1869
        %v1883 = vadd.f32 %v1860, %v1869
        %v1884 = vadd.f32 %v1861, %v1869
        %v1885 = vadd.f32 %v1862, %v1869
        %v1886 = vadd.f32 %v1863, %v1869
        %v1887 = vmax.f32 %v1871, 0.0
        %v1888 = vmax.f32 %v1872, 0.0
        %v1889 = vmax.f32 %v1873, 0.0
        %v1890 = vmax.f32 %v1874, 0.0
        %v1891 = vmax.f32 %v1875, 0.0
        %v1892 = vmax.f32 %v1876, 0.0
        %v1893 = vmax.f32 %v1877, 0.0
        %v1894 = vmax.f32 %v1878, 0.0
        %v1895 = vmax.f32 %v1879, 0.0
        %v1896 = vmax.f32 %v1880, 0.0
        %v1897 = vmax.f32 %v1881, 0.0
        %v1898 = vmax.f32 %v1882, 0.0
        %v1899 = vmax.f32 %v1883, 0.0
        %v1900 = vmax.f32 %v1884, 0.0
        %v1901 = vmax.f32 %v1885, 0.0
        %v1902 = vmax.f32 %v1886, 0.0
        %1903 = vst [vmem:[%s248] sm:$0xff] %v1887
        %1904 = vst [vmem:[%s248 + $0x8] sm:$0xff] %v1888
        %1905 = vst [vmem:[%s248 + $0x10] sm:$0xff] %v1889
        %1906 = vst [vmem:[%s248 + $0x18] sm:$0xff] %v1890
        %1907 = vst [vmem:[%s248 + $0x20] sm:$0xff] %v1891
        %1908 = vst [vmem:[%s248 + $0x28] sm:$0xff] %v1892
        %1909 = vst [vmem:[%s248 + $0x30] sm:$0xff] %v1893
        %1910 = vst [vmem:[%s248 + $0x38] sm:$0xff] %v1894
        %1911 = vst [vmem:[%s248 + $0x40] sm:$0xff] %v1895
        %1912 = vst [vmem:[%s248 + $0x48] sm:$0xff] %v1896
        %1913 = vst [vmem:[%s248 + $0x50] sm:$0xff] %v1897
        %1914 = vst [vmem:[%s248 + $0x58] sm:$0xff] %v1898
        %1915 = vst [vmem:[%s248 + $0x60] sm:$0xff] %v1899
        %1916 = vst [vmem:[%s248 + $0x68] sm:$0xff] %v1900
        %1917 = vst [vmem:[%s248 + $0x70] sm:$0xff] %v1901
        %1918 = vst [vmem:[%s248 + $0x78] sm:$0xff] %v1902
        %s1919 = sand.u32 %s153, 1
        %s1920 = scalar_lea.sflag [#allocation3], %s1919
        %s1921 = sand.u32 %s153, 1
        %s1922 = smul.addr %s1921, 128
        %s1923 = scalar_lea.vmem [#allocation2], %s1922
        // Predicated region
        $region37: #{tpu_custom_call.1} parent=35 // pred_check
          %p1924 = pneg %p163
        $region38: #{tpu_custom_call.1} parent=35 // pred_check_branch
          %1926 = sbr.rel (%p1924) target = $region40
        $region39: #{tpu_custom_call.1} parent=35 // pred_region
          %s1927 = smul.u32 4, %s24
          %s1929 = ssub.s32 2048, 2048
          %1930 = vsyncadd %s1920, %s1929
          %s1931 = smul.addr %s1927, 4
          %s1932 = sadd.s32 %s23, %s1931
          %s1933 = smul.addr %s25, 128
          %s1934 = sadd.s32 %s1932, %s1933
          %s1935 = smul.addr %s1934, 128
          %s1936 = scalar_lea.hbm %s4, %s1935
          %s1937 = sshll.u32 %s1923, 4
          %s1938 = int_to_ptr.vmem [resolvable:$true] %s1937
          %1943 = dma.vmem_to_hbm [thread:$0]  %s1938, 2048, %s1936, %s1920, 128, 128, 8
        $region40: #{tpu_custom_call.1} parent=35 // pred_fallthru
          _
      $region36: #{tpu_custom_call.1} parent=5 // pred_fallthru
        _
      %p1944 = scmp.le.s32.totalorder 2, %s13
      // Predicated region
      $region41: #{tpu_custom_call.1} parent=5 // pred_check
        %p1945 = pneg %p1944
      $region42: #{tpu_custom_call.1} parent=5 // pred_check_branch
        %1947 = sbr.rel (%p1945) target = $region44
      $region43: #{tpu_custom_call.1} parent=5 // pred_region
        %s1948 = ssub.s32 %s13, 2
        // Predicated region
        $region45: #{tpu_custom_call.1} parent=43 // pred_check
          %p1949 = pneg %p169
        $region46: #{tpu_custom_call.1} parent=43 // pred_check_branch
          %1951 = sbr.rel (%p1949) target = $region48
        $region47: #{tpu_custom_call.1} parent=43 // pred_region
          %s1952 = sand.u32 %s154, 1
          %s1953 = scalar_lea.sflag [#allocation3], %s1952
          %s1954 = sand.u32 %s154, 1
          %s1955 = smul.addr %s1954, 128
          %s1956 = scalar_lea.vmem [#allocation2], %s1955
          %1957 = dma.done %s1953, 2048
        $region48: #{tpu_custom_call.1} parent=43 // pred_fallthru
          _
      $region44: #{tpu_custom_call.1} parent=5 // pred_fallthru
        _
    $region6: #{tpu_custom_call.1} parent=1 // loop_footer
      %s17 = sadd.s32 1, %s13
    $region7: #{tpu_custom_call.1} parent=1 // loop_footer_branch
      %12 = sbr.rel target = $region3
    $region8: #{tpu_custom_call.1} parent=1 // loop_exit
      _
    %1958 = vsyncpa [#allocation3], 1
    %s1959 = scalar_lea.sflag [#allocation3], 1
    %1960 = vsyncpa %s1959, 1

</llo_original>
